<compile_context>
chip_gen: v7x
topology: tpu7x:2x2x1
jax: 0.10.0
libtpu: 0.0.40
codegen_flags: <defaults>
</compile_context>

<pallas_src>
import jax
import jax.numpy as jnp
from jax.experimental import pallas as pl
from jax.experimental.pallas import tpu as pltpu


# Tile sizing: largest power-of-two multiple of 128 dividing N, capped at
# _TILE_TARGET.  Production sizing: ~512 on v5e/v6e (128 MiB VMEM), ~256 on
# v7x (64 MiB VMEM).  The demo graph is small so tiles settle at 128.
_TILE_TARGET = 256
_FUSED_VMEM_BUDGET = 8 * 1024 * 1024     # above this, use the tiled/gridded path
_VMEM_LIMIT_BYTES = 48 * 1024 * 1024


# ----------------------------- Pallas kernels ------------------------------


def _fused_kernel(a_ref, x_ref, o_ref):
    # Whole graph resident in VMEM: A loaded from HBM once, both propagation
    # hops and the concatenated output produced in a single launch.
    a = a_ref[...]
    x = x_ref[...]
    f = x.shape[1]
    x1 = jnp.dot(a, x, preferred_element_type=jnp.float32)
    x2 = jnp.dot(a, x1, preferred_element_type=jnp.float32)
    o_ref[:, :f] = x
    o_ref[:, f:2 * f] = x1
    o_ref[:, 2 * f:] = x2


def _prop_kernel(a_ref, x_ref, o_ref, acc_ref):
    # One row tile of x_out = A @ x_in, accumulated over K (source-node) tiles.
    k = pl.program_id(1)

    @pl.when(k == 0)
    def _():
        acc_ref[...] = jnp.zeros_like(acc_ref)

    acc_ref[...] += jnp.dot(a_ref[...], x_ref[...],
                            preferred_element_type=jnp.float32)

    @pl.when(k == pl.num_programs(1) - 1)
    def _():
        o_ref[...] = acc_ref[...]


def _prop_concat_kernel(a_ref, x1k_ref, xrow_ref, x1row_ref, o_ref, acc_ref):
    # Second hop fused with the concat: o = [x | x1 | A @ x1] for one row tile,
    # so the [N, 3F] result is written once, lane-dense.
    k = pl.program_id(1)

    @pl.when(k == 0)
    def _():
        acc_ref[...] = jnp.zeros_like(acc_ref)

    acc_ref[...] += jnp.dot(a_ref[...], x1k_ref[...],
                            preferred_element_type=jnp.float32)

    @pl.when(k == pl.num_programs(1) - 1)
    def _():
        f = xrow_ref.shape[1]
        o_ref[:, :f] = xrow_ref[...]
        o_ref[:, f:2 * f] = x1row_ref[...]
        o_ref[:, 2 * f:] = acc_ref[...]


# ------------------------------ JAX wrappers --------------------------------


def _full_spec(shape):
    return pl.BlockSpec(shape, lambda: (0,) * len(shape))


def _pick_tile(n, target=_TILE_TARGET):
    best = None
    t = 128
    while t <= min(n, target):
        if n % t == 0:
            best = t
        t *= 2
    return best if best is not None else n


def _feature_extract_fused(x, a):
    n, f = x.shape
    return pl.pallas_call(
        _fused_kernel,
        out_shape=jax.ShapeDtypeStruct((n, 3 * f), jnp.float32),
        in_specs=[_full_spec((n, n)), _full_spec((n, f))],
        out_specs=_full_spec((n, 3 * f)),
    )(a, x)


def _prop(x, a, tile_i, tile_k):
    n, f = x.shape
    return pl.pallas_call(
        _prop_kernel,
        out_shape=jax.ShapeDtypeStruct((n, f), jnp.float32),
        grid_spec=pltpu.PrefetchScalarGridSpec(
            num_scalar_prefetch=0,
            grid=(n // tile_i, n // tile_k),
            in_specs=[
                pl.BlockSpec((tile_i, tile_k), lambda i, k: (i, k)),  # A slab
                pl.BlockSpec((tile_k, f), lambda i, k: (k, 0)),       # x (RHS)
            ],
            out_specs=pl.BlockSpec((tile_i, f), lambda i, k: (i, 0)),
            scratch_shapes=[pltpu.VMEM((tile_i, f), jnp.float32)],
        ),
        compiler_params=pltpu.CompilerParams(
            dimension_semantics=("parallel", "arbitrary"),
            vmem_limit_bytes=_VMEM_LIMIT_BYTES,
        ),
    )(a, x)


def _prop_concat(x, x1, a, tile_i, tile_k):
    n, f = x.shape
    return pl.pallas_call(
        _prop_concat_kernel,
        out_shape=jax.ShapeDtypeStruct((n, 3 * f), jnp.float32),
        grid_spec=pltpu.PrefetchScalarGridSpec(
            num_scalar_prefetch=0,
            grid=(n // tile_i, n // tile_k),
            in_specs=[
                pl.BlockSpec((tile_i, tile_k), lambda i, k: (i, k)),  # A slab
                pl.BlockSpec((tile_k, f), lambda i, k: (k, 0)),       # x1 (RHS)
                pl.BlockSpec((tile_i, f), lambda i, k: (i, 0)),       # x rows
                pl.BlockSpec((tile_i, f), lambda i, k: (i, 0)),       # x1 rows
            ],
            out_specs=pl.BlockSpec((tile_i, 3 * f), lambda i, k: (i, 0)),
            scratch_shapes=[pltpu.VMEM((tile_i, f), jnp.float32)],
        ),
        compiler_params=pltpu.CompilerParams(
            dimension_semantics=("parallel", "arbitrary"),
            vmem_limit_bytes=_VMEM_LIMIT_BYTES,
        ),
    )(a, x1, x, x1)


@jax.jit
def feature_extract_fused(x, a):
    return _feature_extract_fused(x, a)


@jax.jit
def feature_extract_tiled(x, a):
    n, _ = x.shape
    tile_i = _pick_tile(n)
    tile_k = _pick_tile(n)
    x1 = _prop(x, a, tile_i, tile_k)
    return _prop_concat(x, x1, a, tile_i, tile_k)


def feature_extract(x, a):
    """Feature_Extract.forward: concat([x, A@x, A@(A@x)], axis=1)."""
    n, f = x.shape
    fused_bytes = 4 * (n * n + 2 * n * f + 3 * n * f)   # A + x + x1 + out in VMEM
    if fused_bytes <= _FUSED_VMEM_BUDGET:
        return feature_extract_fused(x, a)
    return feature_extract_tiled(x, a)


# ------------------------ graph preprocessing (JAX) --------------------------


def build_dense_adjacency(edge_index, edge_weight, num_nodes):
    # A[i, j] = sum of weights of edges j -> i (edge_index row 0 = src, row 1 = dst).
    src, dst = edge_index[0], edge_index[1]
    if edge_weight is None:
        edge_weight = jnp.ones((src.shape[0],), jnp.float32)
    a = jnp.zeros((num_nodes, num_nodes), jnp.float32)
    return a.at[dst, src].add(edge_weight.astype(jnp.float32))


def gcn_norm_dense(edge_index, edge_weight, num_nodes):
    # GCNConv.norm: add_remaining_self_loops(fill=1) then D^-1/2 A D^-1/2 with
    # the degree taken over source indices (old-PyG semantics).  The demo graph
    # carries no pre-existing self-loops, so every node gets a unit self-loop.
    src, dst = edge_index[0], edge_index[1]
    if edge_weight is None:
        edge_weight = jnp.ones((src.shape[0],), jnp.float32)
    keep = (src != dst).astype(jnp.float32)
    a = jnp.zeros((num_nodes, num_nodes), jnp.float32)
    a = a.at[dst, src].add(edge_weight.astype(jnp.float32) * keep)
    a = a + jnp.eye(num_nodes, dtype=jnp.float32)
    deg = jnp.sum(a, axis=0)                          # scatter_add over src
    dinv = jnp.where(deg > 0.0, jax.lax.rsqrt(deg), 0.0)
    return a * dinv[:, None] * dinv[None, :]


def reference_forward(x, a):
    x1 = a @ x
    x2 = a @ x1
    return jnp.concatenate([x, x1, x2], axis=1)


# ---------------------------------- demo -------------------------------------


if __name__ == "__main__":
    # Small synthetic graph; feature dim chosen lane-dense (multiple of 128).
    N, F, E = 384, 128, 2048

    key = jax.random.PRNGKey(0)
    k_x, k_src, k_dst, k_w = jax.random.split(key, 4)
    x = jax.random.normal(k_x, (N, F), jnp.float32)
    src = jax.random.randint(k_src, (E,), 0, N)
    dst = jax.random.randint(k_dst, (E,), 0, N)
    edge_index = jnp.stack([src, dst], axis=0)
    edge_weight = jax.random.uniform(k_w, (E,), jnp.float32, 0.5, 1.5)

    # has_feature=True path: GCN-normalized adjacency (self-loops added).
    a_norm = gcn_norm_dense(edge_index, edge_weight, N)
    # has_feature=False path: raw weighted adjacency.
    a_raw = build_dense_adjacency(edge_index, edge_weight, N)

    ref_norm = reference_forward(x, a_norm)
    ref_raw = reference_forward(x, a_raw)

    # Auto path (fused single-launch kernel for this small graph).
    out_auto = jax.block_until_ready(feature_extract(x, a_norm))
    # Tiled / gridded path (what large graphs use) — exercised explicitly.
    out_tiled = jax.block_until_ready(feature_extract_tiled(x, a_norm))
    out_raw = jax.block_until_ready(feature_extract_tiled(x, a_raw))

    assert out_auto.shape == (N, 3 * F)
    for got, want in ((out_auto, ref_norm), (out_tiled, ref_norm),
                      (out_raw, ref_raw)):
        err = jnp.max(jnp.abs(got - want))
        assert jnp.allclose(got, want, atol=1e-4, rtol=1e-4), (
            f"max abs err {err}")
    print("KERNEL_OK")
</pallas_src>

<mosaic_0001>
module attributes {stable_mosaic.version = 11 : i64} {
  func.func @_fused_kernel(%arg0: memref<384x384xf32, #tpu.memory_space<vmem>>, %arg1: memref<384x128xf32, #tpu.memory_space<vmem>>, %arg2: memref<384x384xf32, #tpu.memory_space<vmem>>) attributes {dimension_semantics = [], scalar_prefetch = 0 : i64, scratch_operands = 0 : i64, tpu.core_type = #tpu.core_type<tc>} {
    %c0 = arith.constant 0 : index
    %c0_0 = arith.constant 0 : index
    %0 = vector.load %arg0[%c0, %c0_0] : memref<384x384xf32, #tpu.memory_space<vmem>>, vector<384x384xf32>
    %c0_1 = arith.constant 0 : index
    %c0_2 = arith.constant 0 : index
    %1 = vector.load %arg1[%c0_1, %c0_2] : memref<384x128xf32, #tpu.memory_space<vmem>>, vector<384x128xf32>
    %cst = arith.constant dense<0.000000e+00> : vector<384x128xf32>
    %2 = tpu.matmul %0, %1, %cst {dimension_numbers = #tpu.dot_dimension_numbers<[1], [0], [0], [1], [0, 0, 1, 1], [], []>} : vector<384x384xf32>, vector<384x128xf32>, vector<384x128xf32> -> vector<384x128xf32>
    %cst_3 = arith.constant dense<0.000000e+00> : vector<384x128xf32>
    %3 = tpu.matmul %0, %2, %cst_3 {dimension_numbers = #tpu.dot_dimension_numbers<[1], [0], [0], [1], [0, 0, 1, 1], [], []>} : vector<384x384xf32>, vector<384x128xf32>, vector<384x128xf32> -> vector<384x128xf32>
    %c0_4 = arith.constant 0 : index
    %c0_5 = arith.constant 0 : index
    %4 = vector.load %arg2[%c0_4, %c0_5] : memref<384x384xf32, #tpu.memory_space<vmem>>, vector<384x128xf32>
    tpu.vector_store %arg2[%c0_4, %c0_5], %1 {strides = array<i32>} : memref<384x384xf32, #tpu.memory_space<vmem>>, vector<384x128xf32>,
    %c0_6 = arith.constant 0 : index
    %c128 = arith.constant 128 : index
    %5 = vector.load %arg2[%c0_6, %c128] : memref<384x384xf32, #tpu.memory_space<vmem>>, vector<384x128xf32>
    tpu.vector_store %arg2[%c0_6, %c128], %2 {strides = array<i32>} : memref<384x384xf32, #tpu.memory_space<vmem>>, vector<384x128xf32>,
    %c0_7 = arith.constant 0 : index
    %c256 = arith.constant 256 : index
    %6 = vector.load %arg2[%c0_7, %c256] : memref<384x384xf32, #tpu.memory_space<vmem>>, vector<384x128xf32>
    tpu.vector_store %arg2[%c0_7, %c256], %3 {strides = array<i32>} : memref<384x384xf32, #tpu.memory_space<vmem>>, vector<384x128xf32>,
    return
  }
}

</mosaic_0001>

<llo_original>
// kernel: feature_extract_fused.1
$region0: #{feature_extract_fused.1}
  #allocation0 [shape = 'u32[]', space=smem, size = 0x4, offset = 0x4, fixed_abs, tag = 'smem constant byte address 0x4 - core index']
  #allocation1 [shape = 'u32[144,128]{1,0:T(1,128)}', space=vmem, size = 0x12000, scoped, tag = 'internal scratch']
  %s0 = inlined_call_operand.hbm [shape: f32[384,384], index: 0, kind: input, shape index: {}]
  %s1 = inlined_call_operand.hbm [shape: f32[384,128], index: 1, kind: input, shape index: {}]
  %s2 = inlined_call_operand.hbm [shape: f32[384,384], index: 2, kind: output, shape index: {}]
  %s3 = sld [smem:[#allocation0]]
  $region26: #{feature_extract_fused.1} parent=0
    _
  %s5 = ssub.s32 1, %s3
  %s6 = scalar_select 0, %s5, %s3
  $region1: #{feature_extract_fused.1} parent=0
    #allocation2 [shape = 'u8[589824]{0}', space=vmem, size = 0x90000, scoped, tag = 'input window, operand 0, single buffered']
    #allocation3 [shape = 's32[1]{0}', space=sflag, size = 0x4, scoped, tag = 'scoped memory for feature_extract_fused.1']
    #allocation4 [shape = 's32[1]{0}', space=sflag, size = 0x4, scoped, tag = 'scoped memory for feature_extract_fused.1']
    #allocation5 [shape = 'u8[196608]{0}', space=vmem, size = 0x30000, scoped, tag = 'input window, operand 1, single buffered']
    #allocation6 [shape = 's32[1]{0}', space=sflag, size = 0x4, scoped, tag = 'scoped memory for feature_extract_fused.1']
    #allocation7 [shape = 'u8[589824]{0}', space=vmem, size = 0x90000, scoped, tag = 'output window, operand 0, single buffered']
    %7 = vsyncpa [#allocation3], 0
    %8 = vsyncpa [#allocation6], 0
    %9 = vsyncpa [#allocation4], 0
    // Predicated region
    $region2: #{feature_extract_fused.1} parent=1 // pred_check
      _
    $region3: #{feature_extract_fused.1} parent=1 // pred_check_branch
      %11 = sbr.rel (0) target = $region5
    $region4: #{feature_extract_fused.1} parent=1 // pred_region
      %s13 = ssub.s32 18432, 18432
      %14 = vsyncadd [#allocation3], %s13
      %s15 = sshll.u32 [#allocation2], 4
      %s16 = int_to_ptr.vmem [resolvable:$true] %s15
      %21 = dma.hbm_to_vmem [thread:$0]  %s0, 18432, %s16, [#allocation3], 384, 384, 24
    $region5: #{feature_extract_fused.1} parent=1 // pred_fallthru
      _
    // Predicated region
    $region6: #{feature_extract_fused.1} parent=1 // pred_check
      _
    $region7: #{feature_extract_fused.1} parent=1 // pred_check_branch
      %23 = sbr.rel (0) target = $region9
    $region8: #{feature_extract_fused.1} parent=1 // pred_region
      %s25 = ssub.s32 6144, 6144
      %26 = vsyncadd [#allocation6], %s25
      %s27 = sshll.u32 [#allocation5], 4
      %s28 = int_to_ptr.vmem [resolvable:$true] %s27
      %33 = dma.hbm_to_vmem [thread:$0]  %s1, 6144, %s28, [#allocation6], 128, 128, 8
    $region9: #{feature_extract_fused.1} parent=1 // pred_fallthru
      _
    // Predicated region
    $region10: #{feature_extract_fused.1} parent=1 // pred_check
      _
    $region11: #{feature_extract_fused.1} parent=1 // pred_check_branch
      %35 = sbr.rel (0) target = $region13
    $region12: #{feature_extract_fused.1} parent=1 // pred_region
      %36 = dma.done [#allocation3], 18432
    $region13: #{feature_extract_fused.1} parent=1 // pred_fallthru
      _
    // Predicated region
    $region14: #{feature_extract_fused.1} parent=1 // pred_check
      _
    $region15: #{feature_extract_fused.1} parent=1 // pred_check_branch
      %38 = sbr.rel (0) target = $region17
    $region16: #{feature_extract_fused.1} parent=1 // pred_region
      %39 = dma.done [#allocation6], 6144
    $region17: #{feature_extract_fused.1} parent=1 // pred_fallthru
      _
    %v40 = vld [vmem:[#allocation2] sm:$0xff]
    %v41 = vld [vmem:[#allocation2 + $0x8] sm:$0xff]
    %v42 = vld [vmem:[#allocation2 + $0x10] sm:$0xff]
    %v43 = vld [vmem:[#allocation2 + $0x18] sm:$0xff]
    %v44 = vld [vmem:[#allocation2 + $0x20] sm:$0xff]
    %v45 = vld [vmem:[#allocation2 + $0x28] sm:$0xff]
    %v46 = vld [vmem:[#allocation2 + $0x30] sm:$0xff]
    %v47 = vld [vmem:[#allocation2 + $0x38] sm:$0xff]
    %v48 = vld [vmem:[#allocation2 + $0x40] sm:$0xff]
    %v49 = vld [vmem:[#allocation2 + $0x48] sm:$0xff]
    %v50 = vld [vmem:[#allocation2 + $0x50] sm:$0xff]
    %v51 = vld [vmem:[#allocation2 + $0x58] sm:$0xff]
    %v52 = vld [vmem:[#allocation2 + $0x60] sm:$0xff]
    %v53 = vld [vmem:[#allocation2 + $0x68] sm:$0xff]
    %v54 = vld [vmem:[#allocation2 + $0x70] sm:$0xff]
    %v55 = vld [vmem:[#allocation2 + $0x78] sm:$0xff]
    %v56 = vld [vmem:[#allocation2 + $0x80] sm:$0xff]
    %v57 = vld [vmem:[#allocation2 + $0x88] sm:$0xff]
    %v58 = vld [vmem:[#allocation2 + $0x90] sm:$0xff]
    %v59 = vld [vmem:[#allocation2 + $0x98] sm:$0xff]
    %v60 = vld [vmem:[#allocation2 + $0xa0] sm:$0xff]
    %v61 = vld [vmem:[#allocation2 + $0xa8] sm:$0xff]
    %v62 = vld [vmem:[#allocation2 + $0xb0] sm:$0xff]
    %v63 = vld [vmem:[#allocation2 + $0xb8] sm:$0xff]
    %v64 = vld [vmem:[#allocation2 + $0xc0] sm:$0xff]
    %v65 = vld [vmem:[#allocation2 + $0xc8] sm:$0xff]
    %v66 = vld [vmem:[#allocation2 + $0xd0] sm:$0xff]
    %v67 = vld [vmem:[#allocation2 + $0xd8] sm:$0xff]
    %v68 = vld [vmem:[#allocation2 + $0xe0] sm:$0xff]
    %v69 = vld [vmem:[#allocation2 + $0xe8] sm:$0xff]
    %v70 = vld [vmem:[#allocation2 + $0xf0] sm:$0xff]
    %v71 = vld [vmem:[#allocation2 + $0xf8] sm:$0xff]
    %v72 = vld [vmem:[#allocation2 + $0x100] sm:$0xff]
    %v73 = vld [vmem:[#allocation2 + $0x108] sm:$0xff]
    %v74 = vld [vmem:[#allocation2 + $0x110] sm:$0xff]
    %v75 = vld [vmem:[#allocation2 + $0x118] sm:$0xff]
    %v76 = vld [vmem:[#allocation2 + $0x120] sm:$0xff]
    %v77 = vld [vmem:[#allocation2 + $0x128] sm:$0xff]
    %v78 = vld [vmem:[#allocation2 + $0x130] sm:$0xff]
    %v79 = vld [vmem:[#allocation2 + $0x138] sm:$0xff]
    %v80 = vld [vmem:[#allocation2 + $0x140] sm:$0xff]
    %v81 = vld [vmem:[#allocation2 + $0x148] sm:$0xff]
    %v82 = vld [vmem:[#allocation2 + $0x150] sm:$0xff]
    %v83 = vld [vmem:[#allocation2 + $0x158] sm:$0xff]
    %v84 = vld [vmem:[#allocation2 + $0x160] sm:$0xff]
    %v85 = vld [vmem:[#allocation2 + $0x168] sm:$0xff]
    %v86 = vld [vmem:[#allocation2 + $0x170] sm:$0xff]
    %v87 = vld [vmem:[#allocation2 + $0x178] sm:$0xff]
    %v88 = vld [vmem:[#allocation2 + $0x180] sm:$0xff]
    %v89 = vld [vmem:[#allocation2 + $0x188] sm:$0xff]
    %v90 = vld [vmem:[#allocation2 + $0x190] sm:$0xff]
    %v91 = vld [vmem:[#allocation2 + $0x198] sm:$0xff]
    %v92 = vld [vmem:[#allocation2 + $0x1a0] sm:$0xff]
    %v93 = vld [vmem:[#allocation2 + $0x1a8] sm:$0xff]
    %v94 = vld [vmem:[#allocation2 + $0x1b0] sm:$0xff]
    %v95 = vld [vmem:[#allocation2 + $0x1b8] sm:$0xff]
    %v96 = vld [vmem:[#allocation2 + $0x1c0] sm:$0xff]
    %v97 = vld [vmem:[#allocation2 + $0x1c8] sm:$0xff]
    %v98 = vld [vmem:[#allocation2 + $0x1d0] sm:$0xff]
    %v99 = vld [vmem:[#allocation2 + $0x1d8] sm:$0xff]
    %v100 = vld [vmem:[#allocation2 + $0x1e0] sm:$0xff]
    %v101 = vld [vmem:[#allocation2 + $0x1e8] sm:$0xff]
    %v102 = vld [vmem:[#allocation2 + $0x1f0] sm:$0xff]
    %v103 = vld [vmem:[#allocation2 + $0x1f8] sm:$0xff]
    %v104 = vld [vmem:[#allocation2 + $0x200] sm:$0xff]
    %v105 = vld [vmem:[#allocation2 + $0x208] sm:$0xff]
    %v106 = vld [vmem:[#allocation2 + $0x210] sm:$0xff]
    %v107 = vld [vmem:[#allocation2 + $0x218] sm:$0xff]
    %v108 = vld [vmem:[#allocation2 + $0x220] sm:$0xff]
    %v109 = vld [vmem:[#allocation2 + $0x228] sm:$0xff]
    %v110 = vld [vmem:[#allocation2 + $0x230] sm:$0xff]
    %v111 = vld [vmem:[#allocation2 + $0x238] sm:$0xff]
    %v112 = vld [vmem:[#allocation2 + $0x240] sm:$0xff]
    %v113 = vld [vmem:[#allocation2 + $0x248] sm:$0xff]
    %v114 = vld [vmem:[#allocation2 + $0x250] sm:$0xff]
    %v115 = vld [vmem:[#allocation2 + $0x258] sm:$0xff]
    %v116 = vld [vmem:[#allocation2 + $0x260] sm:$0xff]
    %v117 = vld [vmem:[#allocation2 + $0x268] sm:$0xff]
    %v118 = vld [vmem:[#allocation2 + $0x270] sm:$0xff]
    %v119 = vld [vmem:[#allocation2 + $0x278] sm:$0xff]
    %v120 = vld [vmem:[#allocation2 + $0x280] sm:$0xff]
    %v121 = vld [vmem:[#allocation2 + $0x288] sm:$0xff]
    %v122 = vld [vmem:[#allocation2 + $0x290] sm:$0xff]
    %v123 = vld [vmem:[#allocation2 + $0x298] sm:$0xff]
    %v124 = vld [vmem:[#allocation2 + $0x2a0] sm:$0xff]
    %v125 = vld [vmem:[#allocation2 + $0x2a8] sm:$0xff]
    %v126 = vld [vmem:[#allocation2 + $0x2b0] sm:$0xff]
    %v127 = vld [vmem:[#allocation2 + $0x2b8] sm:$0xff]
    %v128 = vld [vmem:[#allocation2 + $0x2c0] sm:$0xff]
    %v129 = vld [vmem:[#allocation2 + $0x2c8] sm:$0xff]
    %v130 = vld [vmem:[#allocation2 + $0x2d0] sm:$0xff]
    %v131 = vld [vmem:[#allocation2 + $0x2d8] sm:$0xff]
    %v132 = vld [vmem:[#allocation2 + $0x2e0] sm:$0xff]
    %v133 = vld [vmem:[#allocation2 + $0x2e8] sm:$0xff]
    %v134 = vld [vmem:[#allocation2 + $0x2f0] sm:$0xff]
    %v135 = vld [vmem:[#allocation2 + $0x2f8] sm:$0xff]
    %v136 = vld [vmem:[#allocation2 + $0x300] sm:$0xff]
    %v137 = vld [vmem:[#allocation2 + $0x308] sm:$0xff]
    %v138 = vld [vmem:[#allocation2 + $0x310] sm:$0xff]
    %v139 = vld [vmem:[#allocation2 + $0x318] sm:$0xff]
    %v140 = vld [vmem:[#allocation2 + $0x320] sm:$0xff]
    %v141 = vld [vmem:[#allocation2 + $0x328] sm:$0xff]
    %v142 = vld [vmem:[#allocation2 + $0x330] sm:$0xff]
    %v143 = vld [vmem:[#allocation2 + $0x338] sm:$0xff]
    %v144 = vld [vmem:[#allocation2 + $0x340] sm:$0xff]
    %v145 = vld [vmem:[#allocation2 + $0x348] sm:$0xff]
    %v146 = vld [vmem:[#allocation2 + $0x350] sm:$0xff]
    %v147 = vld [vmem:[#allocation2 + $0x358] sm:$0xff]
    %v148 = vld [vmem:[#allocation2 + $0x360] sm:$0xff]
    %v149 = vld [vmem:[#allocation2 + $0x368] sm:$0xff]
    %v150 = vld [vmem:[#allocation2 + $0x370] sm:$0xff]
    %v151 = vld [vmem:[#allocation2 + $0x378] sm:$0xff]
    %v152 = vld [vmem:[#allocation2 + $0x380] sm:$0xff]
    %v153 = vld [vmem:[#allocation2 + $0x388] sm:$0xff]
    %v154 = vld [vmem:[#allocation2 + $0x390] sm:$0xff]
    %v155 = vld [vmem:[#allocation2 + $0x398] sm:$0xff]
    %v156 = vld [vmem:[#allocation2 + $0x3a0] sm:$0xff]
    %v157 = vld [vmem:[#allocation2 + $0x3a8] sm:$0xff]
    %v158 = vld [vmem:[#allocation2 + $0x3b0] sm:$0xff]
    %v159 = vld [vmem:[#allocation2 + $0x3b8] sm:$0xff]
    %v160 = vld [vmem:[#allocation2 + $0x3c0] sm:$0xff]
    %v161 = vld [vmem:[#allocation2 + $0x3c8] sm:$0xff]
    %v162 = vld [vmem:[#allocation2 + $0x3d0] sm:$0xff]
    %v163 = vld [vmem:[#allocation2 + $0x3d8] sm:$0xff]
    %v164 = vld [vmem:[#allocation2 + $0x3e0] sm:$0xff]
    %v165 = vld [vmem:[#allocation2 + $0x3e8] sm:$0xff]
    %v166 = vld [vmem:[#allocation2 + $0x3f0] sm:$0xff]
    %v167 = vld [vmem:[#allocation2 + $0x3f8] sm:$0xff]
    %v168 = vld [vmem:[#allocation2 + $0x400] sm:$0xff]
    %v169 = vld [vmem:[#allocation2 + $0x408] sm:$0xff]
    %v170 = vld [vmem:[#allocation2 + $0x410] sm:$0xff]
    %v171 = vld [vmem:[#allocation2 + $0x418] sm:$0xff]
    %v172 = vld [vmem:[#allocation2 + $0x420] sm:$0xff]
    %v173 = vld [vmem:[#allocation2 + $0x428] sm:$0xff]
    %v174 = vld [vmem:[#allocation2 + $0x430] sm:$0xff]
    %v175 = vld [vmem:[#allocation2 + $0x438] sm:$0xff]
    %v176 = vld [vmem:[#allocation2 + $0x440] sm:$0xff]
    %v177 = vld [vmem:[#allocation2 + $0x448] sm:$0xff]
    %v178 = vld [vmem:[#allocation2 + $0x450] sm:$0xff]
    %v179 = vld [vmem:[#allocation2 + $0x458] sm:$0xff]
    %v180 = vld [vmem:[#allocation2 + $0x460] sm:$0xff]
    %v181 = vld [vmem:[#allocation2 + $0x468] sm:$0xff]
    %v182 = vld [vmem:[#allocation2 + $0x470] sm:$0xff]
    %v183 = vld [vmem:[#allocation2 + $0x478] sm:$0xff]
    %v184 = vld [vmem:[#allocation5] sm:$0xff]
    %v185 = vld [vmem:[#allocation5 + $0x8] sm:$0xff]
    %v186 = vld [vmem:[#allocation5 + $0x10] sm:$0xff]
    %v187 = vld [vmem:[#allocation5 + $0x18] sm:$0xff]
    %v188 = vld [vmem:[#allocation5 + $0x20] sm:$0xff]
    %v189 = vld [vmem:[#allocation5 + $0x28] sm:$0xff]
    %v190 = vld [vmem:[#allocation5 + $0x30] sm:$0xff]
    %v191 = vld [vmem:[#allocation5 + $0x38] sm:$0xff]
    %v192 = vld [vmem:[#allocation5 + $0x40] sm:$0xff]
    %v193 = vld [vmem:[#allocation5 + $0x48] sm:$0xff]
    %v194 = vld [vmem:[#allocation5 + $0x50] sm:$0xff]
    %v195 = vld [vmem:[#allocation5 + $0x58] sm:$0xff]
    %v196 = vld [vmem:[#allocation5 + $0x60] sm:$0xff]
    %v197 = vld [vmem:[#allocation5 + $0x68] sm:$0xff]
    %v198 = vld [vmem:[#allocation5 + $0x70] sm:$0xff]
    %v199 = vld [vmem:[#allocation5 + $0x78] sm:$0xff]
    %v200 = vld [vmem:[#allocation5 + $0x80] sm:$0xff]
    %v201 = vld [vmem:[#allocation5 + $0x88] sm:$0xff]
    %v202 = vld [vmem:[#allocation5 + $0x90] sm:$0xff]
    %v203 = vld [vmem:[#allocation5 + $0x98] sm:$0xff]
    %v204 = vld [vmem:[#allocation5 + $0xa0] sm:$0xff]
    %v205 = vld [vmem:[#allocation5 + $0xa8] sm:$0xff]
    %v206 = vld [vmem:[#allocation5 + $0xb0] sm:$0xff]
    %v207 = vld [vmem:[#allocation5 + $0xb8] sm:$0xff]
    %v208 = vld [vmem:[#allocation5 + $0xc0] sm:$0xff]
    %v209 = vld [vmem:[#allocation5 + $0xc8] sm:$0xff]
    %v210 = vld [vmem:[#allocation5 + $0xd0] sm:$0xff]
    %v211 = vld [vmem:[#allocation5 + $0xd8] sm:$0xff]
    %v212 = vld [vmem:[#allocation5 + $0xe0] sm:$0xff]
    %v213 = vld [vmem:[#allocation5 + $0xe8] sm:$0xff]
    %v214 = vld [vmem:[#allocation5 + $0xf0] sm:$0xff]
    %v215 = vld [vmem:[#allocation5 + $0xf8] sm:$0xff]
    %v216 = vld [vmem:[#allocation5 + $0x100] sm:$0xff]
    %v217 = vld [vmem:[#allocation5 + $0x108] sm:$0xff]
    %v218 = vld [vmem:[#allocation5 + $0x110] sm:$0xff]
    %v219 = vld [vmem:[#allocation5 + $0x118] sm:$0xff]
    %v220 = vld [vmem:[#allocation5 + $0x120] sm:$0xff]
    %v221 = vld [vmem:[#allocation5 + $0x128] sm:$0xff]
    %v222 = vld [vmem:[#allocation5 + $0x130] sm:$0xff]
    %v223 = vld [vmem:[#allocation5 + $0x138] sm:$0xff]
    %v224 = vld [vmem:[#allocation5 + $0x140] sm:$0xff]
    %v225 = vld [vmem:[#allocation5 + $0x148] sm:$0xff]
    %v226 = vld [vmem:[#allocation5 + $0x150] sm:$0xff]
    %v227 = vld [vmem:[#allocation5 + $0x158] sm:$0xff]
    %v228 = vld [vmem:[#allocation5 + $0x160] sm:$0xff]
    %v229 = vld [vmem:[#allocation5 + $0x168] sm:$0xff]
    %v230 = vld [vmem:[#allocation5 + $0x170] sm:$0xff]
    %v231 = vld [vmem:[#allocation5 + $0x178] sm:$0xff]
    %232 = vmatprep.subr.mxu0 0.0
    %233 = vmatpush1.msra.mxu0 %v184
    %234 = vmatprep.subr.mxu0 0.0
    %235 = vmatpush1.msra.mxu0 %v185
    %236 = vmatprep.subr.mxu0 0.0
    %237 = vmatpush1.msra.mxu0 %v186
    %238 = vmatprep.subr.mxu0 0.0
    %239 = vmatpush1.msra.mxu0 %v187
    %240 = vmatprep.subr.mxu0 0.0
    %241 = vmatpush1.msra.mxu0 %v188
    %242 = vmatprep.subr.mxu0 0.0
    %243 = vmatpush1.msra.mxu0 %v189
    %244 = vmatprep.subr.mxu0 0.0
    %245 = vmatpush1.msra.mxu0 %v190
    %246 = vmatprep.subr.mxu0 0.0
    %247 = vmatpush1.msra.mxu0 %v191
    %248 = vmatprep.subr.mxu0 0.0
    %249 = vmatpush1.msra.mxu0 %v192
    %250 = vmatprep.subr.mxu0 0.0
    %251 = vmatpush1.msra.mxu0 %v193
    %252 = vmatprep.subr.mxu0 0.0
    %253 = vmatpush1.msra.mxu0 %v194
    %254 = vmatprep.subr.mxu0 0.0
    %255 = vmatpush1.msra.mxu0 %v195
    %256 = vmatprep.subr.mxu0 0.0
    %257 = vmatpush1.msra.mxu0 %v196
    %258 = vmatprep.subr.mxu0 0.0
    %259 = vmatpush1.msra.mxu0 %v197
    %260 = vmatprep.subr.mxu0 0.0
    %261 = vmatpush1.msra.mxu0 %v198
    %262 = vmatprep.subr.mxu0 0.0
    %263 = vmatpush1.msra.mxu0 %v199
    %264 = vmatprep.subr.mxu0 0.0
    %265 = vmatpush1.msra.mxu0 %v200
    %266 = vmatprep.subr.mxu0 0.0
    %267 = vmatpush1.msra.mxu0 %v201
    %268 = vmatprep.subr.mxu0 0.0
    %269 = vmatpush1.msra.mxu0 %v202
    %270 = vmatprep.subr.mxu0 0.0
    %271 = vmatpush1.msra.mxu0 %v203
    %272 = vmatprep.subr.mxu0 0.0
    %273 = vmatpush1.msra.mxu0 %v204
    %274 = vmatprep.subr.mxu0 0.0
    %275 = vmatpush1.msra.mxu0 %v205
    %276 = vmatprep.subr.mxu0 0.0
    %277 = vmatpush1.msra.mxu0 %v206
    %278 = vmatprep.subr.mxu0 0.0
    %279 = vmatpush1.msra.mxu0 %v207
    %280 = vmatprep.subr.mxu0 0.0
    %281 = vmatpush1.msra.mxu0 %v208
    %282 = vmatprep.subr.mxu0 0.0
    %283 = vmatpush1.msra.mxu0 %v209
    %284 = vmatprep.subr.mxu0 0.0
    %285 = vmatpush1.msra.mxu0 %v210
    %286 = vmatprep.subr.mxu0 0.0
    %287 = vmatpush1.msra.mxu0 %v211
    %288 = vmatprep.subr.mxu0 0.0
    %289 = vmatpush1.msra.mxu0 %v212
    %290 = vmatprep.subr.mxu0 0.0
    %291 = vmatpush1.msra.mxu0 %v213
    %292 = vmatprep.subr.mxu0 0.0
    %293 = vmatpush1.msra.mxu0 %v214
    %294 = vmatprep.subr.mxu0 0.0
    %295 = vmatpush1.msra.mxu0 %v215
    %296 = vmatprep.mubr.f32.mxu0 %v41
    %297 = vmatmul.mubr.f32.gmra.mrb[0].mxu0 %v40
    %v298 = vpop.f32.mrb[0].mxu0
    %v299 = vadd.f32 0.0, %v298
    %v300 = vpop.f32.mrb[0].mxu0
    %301 = vmatprep.mubr.f32.mxu0 %v44
    %302 = vmatmul.mubr.f32.gmra.mrb[0].mxu0 %v43
    %v303 = vpop.f32.mrb[0].mxu0
    %v304 = vadd.f32 0.0, %v303
    %v305 = vpop.f32.mrb[0].mxu0
    %306 = vmatprep.mubr.f32.mxu0 %v47
    %307 = vmatmul.mubr.f32.gmra.mrb[0].mxu0 %v46
    %v308 = vpop.f32.mrb[0].mxu0
    %v309 = vadd.f32 0.0, %v308
    %v310 = vpop.f32.mrb[0].mxu0
    %311 = vmatprep.mubr.f32.mxu0 %v50
    %312 = vmatmul.mubr.f32.gmra.mrb[0].mxu0 %v49
    %v313 = vpop.f32.mrb[0].mxu0
    %v314 = vadd.f32 0.0, %v313
    %v315 = vpop.f32.mrb[0].mxu0
    %316 = vmatprep.mubr.f32.mxu0 %v53
    %317 = vmatmul.mubr.f32.gmra.mrb[0].mxu0 %v52
    %v318 = vpop.f32.mrb[0].mxu0
    %v319 = vadd.f32 0.0, %v318
    %v320 = vpop.f32.mrb[0].mxu0
    %321 = vmatprep.mubr.f32.mxu0 %v56
    %322 = vmatmul.mubr.f32.gmra.mrb[0].mxu0 %v55
    %v323 = vpop.f32.mrb[0].mxu0
    %v324 = vadd.f32 0.0, %v323
    %v325 = vpop.f32.mrb[0].mxu0
    %326 = vmatprep.mubr.f32.mxu0 %v59
    %327 = vmatmul.mubr.f32.gmra.mrb[0].mxu0 %v58
    %v328 = vpop.f32.mrb[0].mxu0
    %v329 = vadd.f32 0.0, %v328
    %v330 = vpop.f32.mrb[0].mxu0
    %331 = vmatprep.mubr.f32.mxu0 %v62
    %332 = vmatmul.mubr.f32.gmra.mrb[0].mxu0 %v61
    %v333 = vpop.f32.mrb[0].mxu0
    %v334 = vadd.f32 0.0, %v333
    %v335 = vpop.f32.mrb[0].mxu0
    %336 = vmatprep.mubr.f32.mxu0 %v65
    %337 = vmatmul.mubr.f32.gmra.mrb[0].mxu0 %v64
    %v338 = vpop.f32.mrb[0].mxu0
    %v339 = vadd.f32 0.0, %v338
    %v340 = vpop.f32.mrb[0].mxu0
    %341 = vmatprep.mubr.f32.mxu0 %v68
    %342 = vmatmul.mubr.f32.gmra.mrb[0].mxu0 %v67
    %v343 = vpop.f32.mrb[0].mxu0
    %v344 = vadd.f32 0.0, %v343
    %v345 = vpop.f32.mrb[0].mxu0
    %346 = vmatprep.mubr.f32.mxu0 %v71
    %347 = vmatmul.mubr.f32.gmra.mrb[0].mxu0 %v70
    %v348 = vpop.f32.mrb[0].mxu0
    %v349 = vadd.f32 0.0, %v348
    %v350 = vpop.f32.mrb[0].mxu0
    %351 = vmatprep.mubr.f32.mxu0 %v74
    %352 = vmatmul.mubr.f32.gmra.mrb[0].mxu0 %v73
    %v353 = vpop.f32.mrb[0].mxu0
    %v354 = vadd.f32 0.0, %v353
    %v355 = vpop.f32.mrb[0].mxu0
    %356 = vmatprep.mubr.f32.mxu0 %v77
    %357 = vmatmul.mubr.f32.gmra.mrb[0].mxu0 %v76
    %v358 = vpop.f32.mrb[0].mxu0
    %v359 = vadd.f32 0.0, %v358
    %v360 = vpop.f32.mrb[0].mxu0
    %361 = vmatprep.mubr.f32.mxu0 %v80
    %362 = vmatmul.mubr.f32.gmra.mrb[0].mxu0 %v79
    %v363 = vpop.f32.mrb[0].mxu0
    %v364 = vadd.f32 0.0, %v363
    %v365 = vpop.f32.mrb[0].mxu0
    %366 = vmatprep.mubr.f32.mxu0 %v83
    %367 = vmatmul.mubr.f32.gmra.mrb[0].mxu0 %v82
    %v368 = vpop.f32.mrb[0].mxu0
    %v369 = vadd.f32 0.0, %v368
    %v370 = vpop.f32.mrb[0].mxu0
    %371 = vmatprep.mubr.f32.mxu0 %v86
    %372 = vmatmul.mubr.f32.gmra.mrb[0].mxu0 %v85
    %v373 = vpop.f32.mrb[0].mxu0
    %v374 = vadd.f32 0.0, %v373
    %v375 = vpop.f32.mrb[0].mxu0
    %376 = vmatprep.mubr.f32.mxu0 %v89
    %377 = vmatmul.mubr.f32.gmra.mrb[0].mxu0 %v88
    %v378 = vpop.f32.mrb[0].mxu0
    %v379 = vadd.f32 0.0, %v378
    %v380 = vpop.f32.mrb[0].mxu0
    %381 = vmatprep.mubr.f32.mxu0 %v92
    %382 = vmatmul.mubr.f32.gmra.mrb[0].mxu0 %v91
    %v383 = vpop.f32.mrb[0].mxu0
    %v384 = vadd.f32 0.0, %v383
    %v385 = vpop.f32.mrb[0].mxu0
    %386 = vmatprep.mubr.f32.mxu0 %v95
    %387 = vmatmul.mubr.f32.gmra.mrb[0].mxu0 %v94
    %v388 = vpop.f32.mrb[0].mxu0
    %v389 = vadd.f32 0.0, %v388
    %v390 = vpop.f32.mrb[0].mxu0
    %391 = vmatprep.mubr.f32.mxu0 %v98
    %392 = vmatmul.mubr.f32.gmra.mrb[0].mxu0 %v97
    %v393 = vpop.f32.mrb[0].mxu0
    %v394 = vadd.f32 0.0, %v393
    %v395 = vpop.f32.mrb[0].mxu0
    %396 = vmatprep.mubr.f32.mxu0 %v101
    %397 = vmatmul.mubr.f32.gmra.mrb[0].mxu0 %v100
    %v398 = vpop.f32.mrb[0].mxu0
    %v399 = vadd.f32 0.0, %v398
    %v400 = vpop.f32.mrb[0].mxu0
    %401 = vmatprep.mubr.f32.mxu0 %v104
    %402 = vmatmul.mubr.f32.gmra.mrb[0].mxu0 %v103
    %v403 = vpop.f32.mrb[0].mxu0
    %v404 = vadd.f32 0.0, %v403
    %v405 = vpop.f32.mrb[0].mxu0
    %406 = vmatprep.mubr.f32.mxu0 %v107
    %407 = vmatmul.mubr.f32.gmra.mrb[0].mxu0 %v106
    %v408 = vpop.f32.mrb[0].mxu0
    %v409 = vadd.f32 0.0, %v408
    %v410 = vpop.f32.mrb[0].mxu0
    %411 = vmatprep.mubr.f32.mxu0 %v110
    %412 = vmatmul.mubr.f32.gmra.mrb[0].mxu0 %v109
    %v413 = vpop.f32.mrb[0].mxu0
    %v414 = vadd.f32 0.0, %v413
    %v415 = vpop.f32.mrb[0].mxu0
    %416 = vmatprep.mubr.f32.mxu0 %v113
    %417 = vmatmul.mubr.f32.gmra.mrb[0].mxu0 %v112
    %v418 = vpop.f32.mrb[0].mxu0
    %v419 = vadd.f32 0.0, %v418
    %v420 = vpop.f32.mrb[0].mxu0
    %421 = vmatprep.mubr.f32.mxu0 %v116
    %422 = vmatmul.mubr.f32.gmra.mrb[0].mxu0 %v115
    %v423 = vpop.f32.mrb[0].mxu0
    %v424 = vadd.f32 0.0, %v423
    %v425 = vpop.f32.mrb[0].mxu0
    %426 = vmatprep.mubr.f32.mxu0 %v119
    %427 = vmatmul.mubr.f32.gmra.mrb[0].mxu0 %v118
    %v428 = vpop.f32.mrb[0].mxu0
    %v429 = vadd.f32 0.0, %v428
    %v430 = vpop.f32.mrb[0].mxu0
    %431 = vmatprep.mubr.f32.mxu0 %v122
    %432 = vmatmul.mubr.f32.gmra.mrb[0].mxu0 %v121
    %v433 = vpop.f32.mrb[0].mxu0
    %v434 = vadd.f32 0.0, %v433
    %v435 = vpop.f32.mrb[0].mxu0
    %436 = vmatprep.mubr.f32.mxu0 %v125
    %437 = vmatmul.mubr.f32.gmra.mrb[0].mxu0 %v124
    %v438 = vpop.f32.mrb[0].mxu0
    %v439 = vadd.f32 0.0, %v438
    %v440 = vpop.f32.mrb[0].mxu0
    %441 = vmatprep.mubr.f32.mxu0 %v128
    %442 = vmatmul.mubr.f32.gmra.mrb[0].mxu0 %v127
    %v443 = vpop.f32.mrb[0].mxu0
    %v444 = vadd.f32 0.0, %v443
    %v445 = vpop.f32.mrb[0].mxu0
    %446 = vmatprep.mubr.f32.mxu0 %v131
    %447 = vmatmul.mubr.f32.gmra.mrb[0].mxu0 %v130
    %v448 = vpop.f32.mrb[0].mxu0
    %v449 = vadd.f32 0.0, %v448
    %v450 = vpop.f32.mrb[0].mxu0
    %451 = vmatprep.mubr.f32.mxu0 %v134
    %452 = vmatmul.mubr.f32.gmra.mrb[0].mxu0 %v133
    %v453 = vpop.f32.mrb[0].mxu0
    %v454 = vadd.f32 0.0, %v453
    %v455 = vpop.f32.mrb[0].mxu0
    %456 = vmatprep.mubr.f32.mxu0 %v137
    %457 = vmatmul.mubr.f32.gmra.mrb[0].mxu0 %v136
    %v458 = vpop.f32.mrb[0].mxu0
    %v459 = vadd.f32 0.0, %v458
    %v460 = vpop.f32.mrb[0].mxu0
    %461 = vmatprep.mubr.f32.mxu0 %v140
    %462 = vmatmul.mubr.f32.gmra.mrb[0].mxu0 %v139
    %v463 = vpop.f32.mrb[0].mxu0
    %v464 = vadd.f32 0.0, %v463
    %v465 = vpop.f32.mrb[0].mxu0
    %466 = vmatprep.mubr.f32.mxu0 %v143
    %467 = vmatmul.mubr.f32.gmra.mrb[0].mxu0 %v142
    %v468 = vpop.f32.mrb[0].mxu0
    %v469 = vadd.f32 0.0, %v468
    %v470 = vpop.f32.mrb[0].mxu0
    %471 = vmatprep.mubr.f32.mxu0 %v146
    %472 = vmatmul.mubr.f32.gmra.mrb[0].mxu0 %v145
    %v473 = vpop.f32.mrb[0].mxu0
    %v474 = vadd.f32 0.0, %v473
    %v475 = vpop.f32.mrb[0].mxu0
    %476 = vmatprep.mubr.f32.mxu0 %v149
    %477 = vmatmul.mubr.f32.gmra.mrb[0].mxu0 %v148
    %v478 = vpop.f32.mrb[0].mxu0
    %v479 = vadd.f32 0.0, %v478
    %v480 = vpop.f32.mrb[0].mxu0
    %481 = vmatprep.mubr.f32.mxu0 %v152
    %482 = vmatmul.mubr.f32.gmra.mrb[0].mxu0 %v151
    %v483 = vpop.f32.mrb[0].mxu0
    %v484 = vadd.f32 0.0, %v483
    %v485 = vpop.f32.mrb[0].mxu0
    %486 = vmatprep.mubr.f32.mxu0 %v155
    %487 = vmatmul.mubr.f32.gmra.mrb[0].mxu0 %v154
    %v488 = vpop.f32.mrb[0].mxu0
    %v489 = vadd.f32 0.0, %v488
    %v490 = vpop.f32.mrb[0].mxu0
    %491 = vmatprep.mubr.f32.mxu0 %v158
    %492 = vmatmul.mubr.f32.gmra.mrb[0].mxu0 %v157
    %v493 = vpop.f32.mrb[0].mxu0
    %v494 = vadd.f32 0.0, %v493
    %v495 = vpop.f32.mrb[0].mxu0
    %496 = vmatprep.mubr.f32.mxu0 %v161
    %497 = vmatmul.mubr.f32.gmra.mrb[0].mxu0 %v160
    %v498 = vpop.f32.mrb[0].mxu0
    %v499 = vadd.f32 0.0, %v498
    %v500 = vpop.f32.mrb[0].mxu0
    %501 = vmatprep.mubr.f32.mxu0 %v164
    %502 = vmatmul.mubr.f32.gmra.mrb[0].mxu0 %v163
    %v503 = vpop.f32.mrb[0].mxu0
    %v504 = vadd.f32 0.0, %v503
    %v505 = vpop.f32.mrb[0].mxu0
    %506 = vmatprep.mubr.f32.mxu0 %v167
    %507 = vmatmul.mubr.f32.gmra.mrb[0].mxu0 %v166
    %v508 = vpop.f32.mrb[0].mxu0
    %v509 = vadd.f32 0.0, %v508
    %v510 = vpop.f32.mrb[0].mxu0
    %511 = vmatprep.mubr.f32.mxu0 %v170
    %512 = vmatmul.mubr.f32.gmra.mrb[0].mxu0 %v169
    %v513 = vpop.f32.mrb[0].mxu0
    %v514 = vadd.f32 0.0, %v513
    %v515 = vpop.f32.mrb[0].mxu0
    %516 = vmatprep.mubr.f32.mxu0 %v173
    %517 = vmatmul.mubr.f32.gmra.mrb[0].mxu0 %v172
    %v518 = vpop.f32.mrb[0].mxu0
    %v519 = vadd.f32 0.0, %v518
    %v520 = vpop.f32.mrb[0].mxu0
    %521 = vmatprep.mubr.f32.mxu0 %v176
    %522 = vmatmul.mubr.f32.gmra.mrb[0].mxu0 %v175
    %v523 = vpop.f32.mrb[0].mxu0
    %v524 = vadd.f32 0.0, %v523
    %v525 = vpop.f32.mrb[0].mxu0
    %526 = vmatprep.mubr.f32.mxu0 %v179
    %527 = vmatmul.mubr.f32.gmra.mrb[0].mxu0 %v178
    %v528 = vpop.f32.mrb[0].mxu0
    %v529 = vadd.f32 0.0, %v528
    %v530 = vpop.f32.mrb[0].mxu0
    %531 = vmatprep.mubr.f32.mxu0 %v182
    %532 = vmatmul.mubr.f32.gmra.mrb[0].mxu0 %v181
    %v533 = vpop.f32.mrb[0].mxu0
    %v534 = vadd.f32 0.0, %v533
    %v535 = vpop.f32.mrb[0].mxu0
    %536 = vdwg.mxu0
    %537 = vmatprep.subr.mxu0 0.0
    %538 = vmatpush1.msra.mxu0 %v216
    %539 = vmatprep.subr.mxu0 0.0
    %540 = vmatpush1.msra.mxu0 %v217
    %541 = vmatprep.subr.mxu0 0.0
    %542 = vmatpush1.msra.mxu0 %v218
    %543 = vmatprep.subr.mxu0 0.0
    %544 = vmatpush1.msra.mxu0 %v219
    %545 = vmatprep.subr.mxu0 0.0
    %546 = vmatpush1.msra.mxu0 %v220
    %547 = vmatprep.subr.mxu0 0.0
    %548 = vmatpush1.msra.mxu0 %v221
    %549 = vmatprep.subr.mxu0 0.0
    %550 = vmatpush1.msra.mxu0 %v222
    %551 = vmatprep.subr.mxu0 0.0
    %552 = vmatpush1.msra.mxu0 %v223
    %553 = vmatprep.subr.mxu0 0.0
    %554 = vmatpush1.msra.mxu0 %v224
    %555 = vmatprep.subr.mxu0 0.0
    %556 = vmatpush1.msra.mxu0 %v225
    %557 = vmatprep.subr.mxu0 0.0
    %558 = vmatpush1.msra.mxu0 %v226
    %559 = vmatprep.subr.mxu0 0.0
    %560 = vmatpush1.msra.mxu0 %v227
    %561 = vmatprep.subr.mxu0 0.0
    %562 = vmatpush1.msra.mxu0 %v228
    %563 = vmatprep.subr.mxu0 0.0
    %564 = vmatpush1.msra.mxu0 %v229
    %565 = vmatprep.subr.mxu0 0.0
    %566 = vmatpush1.msra.mxu0 %v230
    %567 = vmatprep.subr.mxu0 0.0
    %568 = vmatpush1.msra.mxu0 %v231
    %569 = vmatprep.subr.mxu0 0.0
    %570 = vmatpush1.msra.mxu0 0.0
    %571 = vmatprep.subr.mxu0 0.0
    %572 = vmatpush1.msra.mxu0 0.0
    %573 = vmatprep.subr.mxu0 0.0
    %574 = vmatpush1.msra.mxu0 0.0
    %575 = vmatprep.subr.mxu0 0.0
    %576 = vmatpush1.msra.mxu0 0.0
    %577 = vmatprep.subr.mxu0 0.0
    %578 = vmatpush1.msra.mxu0 0.0
    %579 = vmatprep.subr.mxu0 0.0
    %580 = vmatpush1.msra.mxu0 0.0
    %581 = vmatprep.subr.mxu0 0.0
    %582 = vmatpush1.msra.mxu0 0.0
    %583 = vmatprep.subr.mxu0 0.0
    %584 = vmatpush1.msra.mxu0 0.0
    %585 = vmatprep.subr.mxu0 0.0
    %586 = vmatpush1.msra.mxu0 0.0
    %587 = vmatprep.subr.mxu0 0.0
    %588 = vmatpush1.msra.mxu0 0.0
    %589 = vmatprep.subr.mxu0 0.0
    %590 = vmatpush1.msra.mxu0 0.0
    %591 = vmatprep.subr.mxu0 0.0
    %592 = vmatpush1.msra.mxu0 0.0
    %593 = vmatprep.subr.mxu0 0.0
    %594 = vmatpush1.msra.mxu0 0.0
    %595 = vmatprep.subr.mxu0 0.0
    %596 = vmatpush1.msra.mxu0 0.0
    %597 = vmatprep.subr.mxu0 0.0
    %598 = vmatpush1.msra.mxu0 0.0
    %599 = vmatprep.subr.mxu0 0.0
    %600 = vmatpush1.msra.mxu0 0.0
    %601 = vmatprep.mubr.f32.mxu0 0.0
    %602 = vmatmul.mubr.f32.gmra.mrb[0].mxu0 %v42
    %v603 = vpop.f32.mrb[0].mxu0
    %v604 = vadd.f32 %v299, %v603
    %v605 = vpop.f32.mrb[0].mxu0
    %606 = vmatprep.mubr.f32.mxu0 0.0
    %607 = vmatmul.mubr.f32.gmra.mrb[0].mxu0 %v45
    %v608 = vpop.f32.mrb[0].mxu0
    %v609 = vadd.f32 %v304, %v608
    %v610 = vpop.f32.mrb[0].mxu0
    %611 = vmatprep.mubr.f32.mxu0 0.0
    %612 = vmatmul.mubr.f32.gmra.mrb[0].mxu0 %v48
    %v613 = vpop.f32.mrb[0].mxu0
    %v614 = vadd.f32 %v309, %v613
    %v615 = vpop.f32.mrb[0].mxu0
    %616 = vmatprep.mubr.f32.mxu0 0.0
    %617 = vmatmul.mubr.f32.gmra.mrb[0].mxu0 %v51
    %v618 = vpop.f32.mrb[0].mxu0
    %v619 = vadd.f32 %v314, %v618
    %v620 = vpop.f32.mrb[0].mxu0
    %621 = vmatprep.mubr.f32.mxu0 0.0
    %622 = vmatmul.mubr.f32.gmra.mrb[0].mxu0 %v54
    %v623 = vpop.f32.mrb[0].mxu0
    %v624 = vadd.f32 %v319, %v623
    %v625 = vpop.f32.mrb[0].mxu0
    %626 = vmatprep.mubr.f32.mxu0 0.0
    %627 = vmatmul.mubr.f32.gmra.mrb[0].mxu0 %v57
    %v628 = vpop.f32.mrb[0].mxu0
    %v629 = vadd.f32 %v324, %v628
    %v630 = vpop.f32.mrb[0].mxu0
    %631 = vmatprep.mubr.f32.mxu0 0.0
    %632 = vmatmul.mubr.f32.gmra.mrb[0].mxu0 %v60
    %v633 = vpop.f32.mrb[0].mxu0
    %v634 = vadd.f32 %v329, %v633
    %v635 = vpop.f32.mrb[0].mxu0
    %636 = vmatprep.mubr.f32.mxu0 0.0
    %637 = vmatmul.mubr.f32.gmra.mrb[0].mxu0 %v63
    %v638 = vpop.f32.mrb[0].mxu0
    %v639 = vadd.f32 %v334, %v638
    %v640 = vpop.f32.mrb[0].mxu0
    %641 = vmatprep.mubr.f32.mxu0 0.0
    %642 = vmatmul.mubr.f32.gmra.mrb[0].mxu0 %v66
    %v643 = vpop.f32.mrb[0].mxu0
    %v644 = vadd.f32 %v339, %v643
    %v645 = vpop.f32.mrb[0].mxu0
    %646 = vmatprep.mubr.f32.mxu0 0.0
    %647 = vmatmul.mubr.f32.gmra.mrb[0].mxu0 %v69
    %v648 = vpop.f32.mrb[0].mxu0
    %v649 = vadd.f32 %v344, %v648
    %v650 = vpop.f32.mrb[0].mxu0
    %651 = vmatprep.mubr.f32.mxu0 0.0
    %652 = vmatmul.mubr.f32.gmra.mrb[0].mxu0 %v72
    %v653 = vpop.f32.mrb[0].mxu0
    %v654 = vadd.f32 %v349, %v653
    %v655 = vpop.f32.mrb[0].mxu0
    %656 = vmatprep.mubr.f32.mxu0 0.0
    %657 = vmatmul.mubr.f32.gmra.mrb[0].mxu0 %v75
    %v658 = vpop.f32.mrb[0].mxu0
    %v659 = vadd.f32 %v354, %v658
    %v660 = vpop.f32.mrb[0].mxu0
    %661 = vmatprep.mubr.f32.mxu0 0.0
    %662 = vmatmul.mubr.f32.gmra.mrb[0].mxu0 %v78
    %v663 = vpop.f32.mrb[0].mxu0
    %v664 = vadd.f32 %v359, %v663
    %v665 = vpop.f32.mrb[0].mxu0
    %666 = vmatprep.mubr.f32.mxu0 0.0
    %667 = vmatmul.mubr.f32.gmra.mrb[0].mxu0 %v81
    %v668 = vpop.f32.mrb[0].mxu0
    %v669 = vadd.f32 %v364, %v668
    %v670 = vpop.f32.mrb[0].mxu0
    %671 = vmatprep.mubr.f32.mxu0 0.0
    %672 = vmatmul.mubr.f32.gmra.mrb[0].mxu0 %v84
    %v673 = vpop.f32.mrb[0].mxu0
    %v674 = vadd.f32 %v369, %v673
    %v675 = vpop.f32.mrb[0].mxu0
    %676 = vmatprep.mubr.f32.mxu0 0.0
    %677 = vmatmul.mubr.f32.gmra.mrb[0].mxu0 %v87
    %v678 = vpop.f32.mrb[0].mxu0
    %v679 = vadd.f32 %v374, %v678
    %v680 = vpop.f32.mrb[0].mxu0
    %681 = vmatprep.mubr.f32.mxu0 0.0
    %682 = vmatmul.mubr.f32.gmra.mrb[0].mxu0 %v90
    %v683 = vpop.f32.mrb[0].mxu0
    %v684 = vadd.f32 %v379, %v683
    %v685 = vpop.f32.mrb[0].mxu0
    %686 = vmatprep.mubr.f32.mxu0 0.0
    %687 = vmatmul.mubr.f32.gmra.mrb[0].mxu0 %v93
    %v688 = vpop.f32.mrb[0].mxu0
    %v689 = vadd.f32 %v384, %v688
    %v690 = vpop.f32.mrb[0].mxu0
    %691 = vmatprep.mubr.f32.mxu0 0.0
    %692 = vmatmul.mubr.f32.gmra.mrb[0].mxu0 %v96
    %v693 = vpop.f32.mrb[0].mxu0
    %v694 = vadd.f32 %v389, %v693
    %v695 = vpop.f32.mrb[0].mxu0
    %696 = vmatprep.mubr.f32.mxu0 0.0
    %697 = vmatmul.mubr.f32.gmra.mrb[0].mxu0 %v99
    %v698 = vpop.f32.mrb[0].mxu0
    %v699 = vadd.f32 %v394, %v698
    %v700 = vpop.f32.mrb[0].mxu0
    %701 = vmatprep.mubr.f32.mxu0 0.0
    %702 = vmatmul.mubr.f32.gmra.mrb[0].mxu0 %v102
    %v703 = vpop.f32.mrb[0].mxu0
    %v704 = vadd.f32 %v399, %v703
    %v705 = vpop.f32.mrb[0].mxu0
    %706 = vmatprep.mubr.f32.mxu0 0.0
    %707 = vmatmul.mubr.f32.gmra.mrb[0].mxu0 %v105
    %v708 = vpop.f32.mrb[0].mxu0
    %v709 = vadd.f32 %v404, %v708
    %v710 = vpop.f32.mrb[0].mxu0
    %711 = vmatprep.mubr.f32.mxu0 0.0
    %712 = vmatmul.mubr.f32.gmra.mrb[0].mxu0 %v108
    %v713 = vpop.f32.mrb[0].mxu0
    %v714 = vadd.f32 %v409, %v713
    %v715 = vpop.f32.mrb[0].mxu0
    %716 = vmatprep.mubr.f32.mxu0 0.0
    %717 = vmatmul.mubr.f32.gmra.mrb[0].mxu0 %v111
    %v718 = vpop.f32.mrb[0].mxu0
    %v719 = vadd.f32 %v414, %v718
    %v720 = vpop.f32.mrb[0].mxu0
    %721 = vmatprep.mubr.f32.mxu0 0.0
    %722 = vmatmul.mubr.f32.gmra.mrb[0].mxu0 %v114
    %v723 = vpop.f32.mrb[0].mxu0
    %v724 = vadd.f32 %v419, %v723
    %v725 = vpop.f32.mrb[0].mxu0
    %726 = vmatprep.mubr.f32.mxu0 0.0
    %727 = vmatmul.mubr.f32.gmra.mrb[0].mxu0 %v117
    %v728 = vpop.f32.mrb[0].mxu0
    %v729 = vadd.f32 %v424, %v728
    %v730 = vpop.f32.mrb[0].mxu0
    %731 = vmatprep.mubr.f32.mxu0 0.0
    %732 = vmatmul.mubr.f32.gmra.mrb[0].mxu0 %v120
    %v733 = vpop.f32.mrb[0].mxu0
    %v734 = vadd.f32 %v429, %v733
    %v735 = vpop.f32.mrb[0].mxu0
    %736 = vmatprep.mubr.f32.mxu0 0.0
    %737 = vmatmul.mubr.f32.gmra.mrb[0].mxu0 %v123
    %v738 = vpop.f32.mrb[0].mxu0
    %v739 = vadd.f32 %v434, %v738
    %v740 = vpop.f32.mrb[0].mxu0
    %741 = vmatprep.mubr.f32.mxu0 0.0
    %742 = vmatmul.mubr.f32.gmra.mrb[0].mxu0 %v126
    %v743 = vpop.f32.mrb[0].mxu0
    %v744 = vadd.f32 %v439, %v743
    %v745 = vpop.f32.mrb[0].mxu0
    %746 = vmatprep.mubr.f32.mxu0 0.0
    %747 = vmatmul.mubr.f32.gmra.mrb[0].mxu0 %v129
    %v748 = vpop.f32.mrb[0].mxu0
    %v749 = vadd.f32 %v444, %v748
    %v750 = vpop.f32.mrb[0].mxu0
    %751 = vmatprep.mubr.f32.mxu0 0.0
    %752 = vmatmul.mubr.f32.gmra.mrb[0].mxu0 %v132
    %v753 = vpop.f32.mrb[0].mxu0
    %v754 = vadd.f32 %v449, %v753
    %v755 = vpop.f32.mrb[0].mxu0
    %756 = vmatprep.mubr.f32.mxu0 0.0
    %757 = vmatmul.mubr.f32.gmra.mrb[0].mxu0 %v135
    %v758 = vpop.f32.mrb[0].mxu0
    %v759 = vadd.f32 %v454, %v758
    %v760 = vpop.f32.mrb[0].mxu0
    %761 = vmatprep.mubr.f32.mxu0 0.0
    %762 = vmatmul.mubr.f32.gmra.mrb[0].mxu0 %v138
    %v763 = vpop.f32.mrb[0].mxu0
    %v764 = vadd.f32 %v459, %v763
    %v765 = vpop.f32.mrb[0].mxu0
    %766 = vmatprep.mubr.f32.mxu0 0.0
    %767 = vmatmul.mubr.f32.gmra.mrb[0].mxu0 %v141
    %v768 = vpop.f32.mrb[0].mxu0
    %v769 = vadd.f32 %v464, %v768
    %v770 = vpop.f32.mrb[0].mxu0
    %771 = vmatprep.mubr.f32.mxu0 0.0
    %772 = vmatmul.mubr.f32.gmra.mrb[0].mxu0 %v144
    %v773 = vpop.f32.mrb[0].mxu0
    %v774 = vadd.f32 %v469, %v773
    %v775 = vpop.f32.mrb[0].mxu0
    %776 = vmatprep.mubr.f32.mxu0 0.0
    %777 = vmatmul.mubr.f32.gmra.mrb[0].mxu0 %v147
    %v778 = vpop.f32.mrb[0].mxu0
    %v779 = vadd.f32 %v474, %v778
    %v780 = vpop.f32.mrb[0].mxu0
    %781 = vmatprep.mubr.f32.mxu0 0.0
    %782 = vmatmul.mubr.f32.gmra.mrb[0].mxu0 %v150
    %v783 = vpop.f32.mrb[0].mxu0
    %v784 = vadd.f32 %v479, %v783
    %v785 = vpop.f32.mrb[0].mxu0
    %786 = vmatprep.mubr.f32.mxu0 0.0
    %787 = vmatmul.mubr.f32.gmra.mrb[0].mxu0 %v153
    %v788 = vpop.f32.mrb[0].mxu0
    %v789 = vadd.f32 %v484, %v788
    %v790 = vpop.f32.mrb[0].mxu0
    %791 = vmatprep.mubr.f32.mxu0 0.0
    %792 = vmatmul.mubr.f32.gmra.mrb[0].mxu0 %v156
    %v793 = vpop.f32.mrb[0].mxu0
    %v794 = vadd.f32 %v489, %v793
    %v795 = vpop.f32.mrb[0].mxu0
    %796 = vmatprep.mubr.f32.mxu0 0.0
    %797 = vmatmul.mubr.f32.gmra.mrb[0].mxu0 %v159
    %v798 = vpop.f32.mrb[0].mxu0
    %v799 = vadd.f32 %v494, %v798
    %v800 = vpop.f32.mrb[0].mxu0
    %801 = vmatprep.mubr.f32.mxu0 0.0
    %802 = vmatmul.mubr.f32.gmra.mrb[0].mxu0 %v162
    %v803 = vpop.f32.mrb[0].mxu0
    %v804 = vadd.f32 %v499, %v803
    %v805 = vpop.f32.mrb[0].mxu0
    %806 = vmatprep.mubr.f32.mxu0 0.0
    %807 = vmatmul.mubr.f32.gmra.mrb[0].mxu0 %v165
    %v808 = vpop.f32.mrb[0].mxu0
    %v809 = vadd.f32 %v504, %v808
    %v810 = vpop.f32.mrb[0].mxu0
    %811 = vmatprep.mubr.f32.mxu0 0.0
    %812 = vmatmul.mubr.f32.gmra.mrb[0].mxu0 %v168
    %v813 = vpop.f32.mrb[0].mxu0
    %v814 = vadd.f32 %v509, %v813
    %v815 = vpop.f32.mrb[0].mxu0
    %816 = vmatprep.mubr.f32.mxu0 0.0
    %817 = vmatmul.mubr.f32.gmra.mrb[0].mxu0 %v171
    %v818 = vpop.f32.mrb[0].mxu0
    %v819 = vadd.f32 %v514, %v818
    %v820 = vpop.f32.mrb[0].mxu0
    %821 = vmatprep.mubr.f32.mxu0 0.0
    %822 = vmatmul.mubr.f32.gmra.mrb[0].mxu0 %v174
    %v823 = vpop.f32.mrb[0].mxu0
    %v824 = vadd.f32 %v519, %v823
    %v825 = vpop.f32.mrb[0].mxu0
    %826 = vmatprep.mubr.f32.mxu0 0.0
    %827 = vmatmul.mubr.f32.gmra.mrb[0].mxu0 %v177
    %v828 = vpop.f32.mrb[0].mxu0
    %v829 = vadd.f32 %v524, %v828
    %v830 = vpop.f32.mrb[0].mxu0
    %831 = vmatprep.mubr.f32.mxu0 0.0
    %832 = vmatmul.mubr.f32.gmra.mrb[0].mxu0 %v180
    %v833 = vpop.f32.mrb[0].mxu0
    %v834 = vadd.f32 %v529, %v833
    %v835 = vpop.f32.mrb[0].mxu0
    %836 = vmatprep.mubr.f32.mxu0 0.0
    %837 = vmatmul.mubr.f32.gmra.mrb[0].mxu0 %v183
    %v838 = vpop.f32.mrb[0].mxu0
    %v839 = vadd.f32 %v534, %v838
    %v840 = vpop.f32.mrb[0].mxu0
    %841 = vdwg.mxu0
    %842 = vmatprep.subr.mxu0 0.0
    %843 = vmatpush1.msra.mxu0 %v604
    %844 = vmatprep.subr.mxu0 0.0
    %845 = vmatpush1.msra.mxu0 %v609
    %846 = vmatprep.subr.mxu0 0.0
    %847 = vmatpush1.msra.mxu0 %v614
    %848 = vmatprep.subr.mxu0 0.0
    %849 = vmatpush1.msra.mxu0 %v619
    %850 = vmatprep.subr.mxu0 0.0
    %851 = vmatpush1.msra.mxu0 %v624
    %852 = vmatprep.subr.mxu0 0.0
    %853 = vmatpush1.msra.mxu0 %v629
    %854 = vmatprep.subr.mxu0 0.0
    %855 = vmatpush1.msra.mxu0 %v634
    %856 = vmatprep.subr.mxu0 0.0
    %857 = vmatpush1.msra.mxu0 %v639
    %858 = vmatprep.subr.mxu0 0.0
    %859 = vmatpush1.msra.mxu0 %v644
    %860 = vmatprep.subr.mxu0 0.0
    %861 = vmatpush1.msra.mxu0 %v649
    %862 = vmatprep.subr.mxu0 0.0
    %863 = vmatpush1.msra.mxu0 %v654
    %864 = vmatprep.subr.mxu0 0.0
    %865 = vmatpush1.msra.mxu0 %v659
    %866 = vmatprep.subr.mxu0 0.0
    %867 = vmatpush1.msra.mxu0 %v664
    %868 = vmatprep.subr.mxu0 0.0
    %869 = vmatpush1.msra.mxu0 %v669
    %870 = vmatprep.subr.mxu0 0.0
    %871 = vmatpush1.msra.mxu0 %v674
    %872 = vmatprep.subr.mxu0 0.0
    %873 = vmatpush1.msra.mxu0 %v679
    %874 = vmatprep.subr.mxu0 0.0
    %875 = vmatpush1.msra.mxu0 %v684
    %876 = vmatprep.subr.mxu0 0.0
    %877 = vmatpush1.msra.mxu0 %v689
    %878 = vmatprep.subr.mxu0 0.0
    %879 = vmatpush1.msra.mxu0 %v694
    %880 = vmatprep.subr.mxu0 0.0
    %881 = vmatpush1.msra.mxu0 %v699
    %882 = vmatprep.subr.mxu0 0.0
    %883 = vmatpush1.msra.mxu0 %v704
    %884 = vmatprep.subr.mxu0 0.0
    %885 = vmatpush1.msra.mxu0 %v709
    %886 = vmatprep.subr.mxu0 0.0
    %887 = vmatpush1.msra.mxu0 %v714
    %888 = vmatprep.subr.mxu0 0.0
    %889 = vmatpush1.msra.mxu0 %v719
    %890 = vmatprep.subr.mxu0 0.0
    %891 = vmatpush1.msra.mxu0 %v724
    %892 = vmatprep.subr.mxu0 0.0
    %893 = vmatpush1.msra.mxu0 %v729
    %894 = vmatprep.subr.mxu0 0.0
    %895 = vmatpush1.msra.mxu0 %v734
    %896 = vmatprep.subr.mxu0 0.0
    %897 = vmatpush1.msra.mxu0 %v739
    %898 = vmatprep.subr.mxu0 0.0
    %899 = vmatpush1.msra.mxu0 %v744
    %900 = vmatprep.subr.mxu0 0.0
    %901 = vmatpush1.msra.mxu0 %v749
    %902 = vmatprep.subr.mxu0 0.0
    %903 = vmatpush1.msra.mxu0 %v754
    %904 = vmatprep.subr.mxu0 0.0
    %905 = vmatpush1.msra.mxu0 %v759
    %906 = vmatprep.mubr.f32.mxu0 %v41
    %907 = vmatmul.mubr.f32.gmra.mrb[0].mxu0 %v40
    %v908 = vpop.f32.mrb[0].mxu0
    %v909 = vadd.f32 0.0, %v908
    %v910 = vpop.f32.mrb[0].mxu0
    %911 = vmatprep.mubr.f32.mxu0 %v44
    %912 = vmatmul.mubr.f32.gmra.mrb[0].mxu0 %v43
    %v913 = vpop.f32.mrb[0].mxu0
    %v914 = vadd.f32 0.0, %v913
    %v915 = vpop.f32.mrb[0].mxu0
    %916 = vmatprep.mubr.f32.mxu0 %v47
    %917 = vmatmul.mubr.f32.gmra.mrb[0].mxu0 %v46
    %v918 = vpop.f32.mrb[0].mxu0
    %v919 = vadd.f32 0.0, %v918
    %v920 = vpop.f32.mrb[0].mxu0
    %921 = vmatprep.mubr.f32.mxu0 %v50
    %922 = vmatmul.mubr.f32.gmra.mrb[0].mxu0 %v49
    %v923 = vpop.f32.mrb[0].mxu0
    %v924 = vadd.f32 0.0, %v923
    %v925 = vpop.f32.mrb[0].mxu0
    %926 = vmatprep.mubr.f32.mxu0 %v53
    %927 = vmatmul.mubr.f32.gmra.mrb[0].mxu0 %v52
    %v928 = vpop.f32.mrb[0].mxu0
    %v929 = vadd.f32 0.0, %v928
    %v930 = vpop.f32.mrb[0].mxu0
    %931 = vmatprep.mubr.f32.mxu0 %v56
    %932 = vmatmul.mubr.f32.gmra.mrb[0].mxu0 %v55
    %v933 = vpop.f32.mrb[0].mxu0
    %v934 = vadd.f32 0.0, %v933
    %v935 = vpop.f32.mrb[0].mxu0
    %936 = vmatprep.mubr.f32.mxu0 %v59
    %937 = vmatmul.mubr.f32.gmra.mrb[0].mxu0 %v58
    %v938 = vpop.f32.mrb[0].mxu0
    %v939 = vadd.f32 0.0, %v938
    %v940 = vpop.f32.mrb[0].mxu0
    %941 = vmatprep.mubr.f32.mxu0 %v62
    %942 = vmatmul.mubr.f32.gmra.mrb[0].mxu0 %v61
    %v943 = vpop.f32.mrb[0].mxu0
    %v944 = vadd.f32 0.0, %v943
    %v945 = vpop.f32.mrb[0].mxu0
    %946 = vmatprep.mubr.f32.mxu0 %v65
    %947 = vmatmul.mubr.f32.gmra.mrb[0].mxu0 %v64
    %v948 = vpop.f32.mrb[0].mxu0
    %v949 = vadd.f32 0.0, %v948
    %v950 = vpop.f32.mrb[0].mxu0
    %951 = vmatprep.mubr.f32.mxu0 %v68
    %952 = vmatmul.mubr.f32.gmra.mrb[0].mxu0 %v67
    %v953 = vpop.f32.mrb[0].mxu0
    %v954 = vadd.f32 0.0, %v953
    %v955 = vpop.f32.mrb[0].mxu0
    %956 = vmatprep.mubr.f32.mxu0 %v71
    %957 = vmatmul.mubr.f32.gmra.mrb[0].mxu0 %v70
    %v958 = vpop.f32.mrb[0].mxu0
    %v959 = vadd.f32 0.0, %v958
    %v960 = vpop.f32.mrb[0].mxu0
    %961 = vmatprep.mubr.f32.mxu0 %v74
    %962 = vmatmul.mubr.f32.gmra.mrb[0].mxu0 %v73
    %v963 = vpop.f32.mrb[0].mxu0
    %v964 = vadd.f32 0.0, %v963
    %v965 = vpop.f32.mrb[0].mxu0
    %966 = vmatprep.mubr.f32.mxu0 %v77
    %967 = vmatmul.mubr.f32.gmra.mrb[0].mxu0 %v76
    %v968 = vpop.f32.mrb[0].mxu0
    %v969 = vadd.f32 0.0, %v968
    %v970 = vpop.f32.mrb[0].mxu0
    %971 = vmatprep.mubr.f32.mxu0 %v80
    %972 = vmatmul.mubr.f32.gmra.mrb[0].mxu0 %v79
    %v973 = vpop.f32.mrb[0].mxu0
    %v974 = vadd.f32 0.0, %v973
    %v975 = vpop.f32.mrb[0].mxu0
    %976 = vmatprep.mubr.f32.mxu0 %v83
    %977 = vmatmul.mubr.f32.gmra.mrb[0].mxu0 %v82
    %v978 = vpop.f32.mrb[0].mxu0
    %v979 = vadd.f32 0.0, %v978
    %v980 = vpop.f32.mrb[0].mxu0
    %981 = vmatprep.mubr.f32.mxu0 %v86
    %982 = vmatmul.mubr.f32.gmra.mrb[0].mxu0 %v85
    %v983 = vpop.f32.mrb[0].mxu0
    %v984 = vadd.f32 0.0, %v983
    %v985 = vpop.f32.mrb[0].mxu0
    %986 = vmatprep.mubr.f32.mxu0 %v89
    %987 = vmatmul.mubr.f32.gmra.mrb[0].mxu0 %v88
    %v988 = vpop.f32.mrb[0].mxu0
    %v989 = vadd.f32 0.0, %v988
    %v990 = vpop.f32.mrb[0].mxu0
    %991 = vmatprep.mubr.f32.mxu0 %v92
    %992 = vmatmul.mubr.f32.gmra.mrb[0].mxu0 %v91
    %v993 = vpop.f32.mrb[0].mxu0
    %v994 = vadd.f32 0.0, %v993
    %v995 = vpop.f32.mrb[0].mxu0
    %996 = vmatprep.mubr.f32.mxu0 %v95
    %997 = vmatmul.mubr.f32.gmra.mrb[0].mxu0 %v94
    %v998 = vpop.f32.mrb[0].mxu0
    %v999 = vadd.f32 0.0, %v998
    %v1000 = vpop.f32.mrb[0].mxu0
    %1001 = vmatprep.mubr.f32.mxu0 %v98
    %1002 = vmatmul.mubr.f32.gmra.mrb[0].mxu0 %v97
    %v1003 = vpop.f32.mrb[0].mxu0
    %v1004 = vadd.f32 0.0, %v1003
    %v1005 = vpop.f32.mrb[0].mxu0
    %1006 = vmatprep.mubr.f32.mxu0 %v101
    %1007 = vmatmul.mubr.f32.gmra.mrb[0].mxu0 %v100
    %v1008 = vpop.f32.mrb[0].mxu0
    %v1009 = vadd.f32 0.0, %v1008
    %v1010 = vpop.f32.mrb[0].mxu0
    %1011 = vmatprep.mubr.f32.mxu0 %v104
    %1012 = vmatmul.mubr.f32.gmra.mrb[0].mxu0 %v103
    %v1013 = vpop.f32.mrb[0].mxu0
    %v1014 = vadd.f32 0.0, %v1013
    %v1015 = vpop.f32.mrb[0].mxu0
    %1016 = vmatprep.mubr.f32.mxu0 %v107
    %1017 = vmatmul.mubr.f32.gmra.mrb[0].mxu0 %v106
    %v1018 = vpop.f32.mrb[0].mxu0
    %v1019 = vadd.f32 0.0, %v1018
    %v1020 = vpop.f32.mrb[0].mxu0
    %1021 = vmatprep.mubr.f32.mxu0 %v110
    %1022 = vmatmul.mubr.f32.gmra.mrb[0].mxu0 %v109
    %v1023 = vpop.f32.mrb[0].mxu0
    %v1024 = vadd.f32 0.0, %v1023
    %v1025 = vpop.f32.mrb[0].mxu0
    %1026 = vmatprep.mubr.f32.mxu0 %v113
    %1027 = vmatmul.mubr.f32.gmra.mrb[0].mxu0 %v112
    %v1028 = vpop.f32.mrb[0].mxu0
    %v1029 = vadd.f32 0.0, %v1028
    %v1030 = vpop.f32.mrb[0].mxu0
    %1031 = vmatprep.mubr.f32.mxu0 %v116
    %1032 = vmatmul.mubr.f32.gmra.mrb[0].mxu0 %v115
    %v1033 = vpop.f32.mrb[0].mxu0
    %v1034 = vadd.f32 0.0, %v1033
    %v1035 = vpop.f32.mrb[0].mxu0
    %1036 = vmatprep.mubr.f32.mxu0 %v119
    %1037 = vmatmul.mubr.f32.gmra.mrb[0].mxu0 %v118
    %v1038 = vpop.f32.mrb[0].mxu0
    %v1039 = vadd.f32 0.0, %v1038
    %v1040 = vpop.f32.mrb[0].mxu0
    %1041 = vmatprep.mubr.f32.mxu0 %v122
    %1042 = vmatmul.mubr.f32.gmra.mrb[0].mxu0 %v121
    %v1043 = vpop.f32.mrb[0].mxu0
    %v1044 = vadd.f32 0.0, %v1043
    %v1045 = vpop.f32.mrb[0].mxu0
    %1046 = vmatprep.mubr.f32.mxu0 %v125
    %1047 = vmatmul.mubr.f32.gmra.mrb[0].mxu0 %v124
    %v1048 = vpop.f32.mrb[0].mxu0
    %v1049 = vadd.f32 0.0, %v1048
    %v1050 = vpop.f32.mrb[0].mxu0
    %1051 = vmatprep.mubr.f32.mxu0 %v128
    %1052 = vmatmul.mubr.f32.gmra.mrb[0].mxu0 %v127
    %v1053 = vpop.f32.mrb[0].mxu0
    %v1054 = vadd.f32 0.0, %v1053
    %v1055 = vpop.f32.mrb[0].mxu0
    %1056 = vmatprep.mubr.f32.mxu0 %v131
    %1057 = vmatmul.mubr.f32.gmra.mrb[0].mxu0 %v130
    %v1058 = vpop.f32.mrb[0].mxu0
    %v1059 = vadd.f32 0.0, %v1058
    %v1060 = vpop.f32.mrb[0].mxu0
    %1061 = vmatprep.mubr.f32.mxu0 %v134
    %1062 = vmatmul.mubr.f32.gmra.mrb[0].mxu0 %v133
    %v1063 = vpop.f32.mrb[0].mxu0
    %v1064 = vadd.f32 0.0, %v1063
    %v1065 = vpop.f32.mrb[0].mxu0
    %1066 = vmatprep.mubr.f32.mxu0 %v137
    %1067 = vmatmul.mubr.f32.gmra.mrb[0].mxu0 %v136
    %v1068 = vpop.f32.mrb[0].mxu0
    %v1069 = vadd.f32 0.0, %v1068
    %v1070 = vpop.f32.mrb[0].mxu0
    %1071 = vmatprep.mubr.f32.mxu0 %v140
    %1072 = vmatmul.mubr.f32.gmra.mrb[0].mxu0 %v139
    %v1073 = vpop.f32.mrb[0].mxu0
    %v1074 = vadd.f32 0.0, %v1073
    %v1075 = vpop.f32.mrb[0].mxu0
    %1076 = vmatprep.mubr.f32.mxu0 %v143
    %1077 = vmatmul.mubr.f32.gmra.mrb[0].mxu0 %v142
    %v1078 = vpop.f32.mrb[0].mxu0
    %v1079 = vadd.f32 0.0, %v1078
    %v1080 = vpop.f32.mrb[0].mxu0
    %1081 = vmatprep.mubr.f32.mxu0 %v146
    %1082 = vmatmul.mubr.f32.gmra.mrb[0].mxu0 %v145
    %v1083 = vpop.f32.mrb[0].mxu0
    %v1084 = vadd.f32 0.0, %v1083
    %v1085 = vpop.f32.mrb[0].mxu0
    %1086 = vmatprep.mubr.f32.mxu0 %v149
    %1087 = vmatmul.mubr.f32.gmra.mrb[0].mxu0 %v148
    %v1088 = vpop.f32.mrb[0].mxu0
    %v1089 = vadd.f32 0.0, %v1088
    %v1090 = vpop.f32.mrb[0].mxu0
    %1091 = vmatprep.mubr.f32.mxu0 %v152
    %1092 = vmatmul.mubr.f32.gmra.mrb[0].mxu0 %v151
    %v1093 = vpop.f32.mrb[0].mxu0
    %v1094 = vadd.f32 0.0, %v1093
    %v1095 = vpop.f32.mrb[0].mxu0
    %1096 = vmatprep.mubr.f32.mxu0 %v155
    %1097 = vmatmul.mubr.f32.gmra.mrb[0].mxu0 %v154
    %v1098 = vpop.f32.mrb[0].mxu0
    %v1099 = vadd.f32 0.0, %v1098
    %v1100 = vpop.f32.mrb[0].mxu0
    %1101 = vmatprep.mubr.f32.mxu0 %v158
    %1102 = vmatmul.mubr.f32.gmra.mrb[0].mxu0 %v157
    %v1103 = vpop.f32.mrb[0].mxu0
    %v1104 = vadd.f32 0.0, %v1103
    %v1105 = vpop.f32.mrb[0].mxu0
    %1106 = vmatprep.mubr.f32.mxu0 %v161
    %1107 = vmatmul.mubr.f32.gmra.mrb[0].mxu0 %v160
    %v1108 = vpop.f32.mrb[0].mxu0
    %v1109 = vadd.f32 0.0, %v1108
    %v1110 = vpop.f32.mrb[0].mxu0
    %1111 = vmatprep.mubr.f32.mxu0 %v164
    %1112 = vmatmul.mubr.f32.gmra.mrb[0].mxu0 %v163
    %v1113 = vpop.f32.mrb[0].mxu0
    %v1114 = vadd.f32 0.0, %v1113
    %v1115 = vpop.f32.mrb[0].mxu0
    %1116 = vmatprep.mubr.f32.mxu0 %v167
    %1117 = vmatmul.mubr.f32.gmra.mrb[0].mxu0 %v166
    %v1118 = vpop.f32.mrb[0].mxu0
    %v1119 = vadd.f32 0.0, %v1118
    %v1120 = vpop.f32.mrb[0].mxu0
    %1121 = vmatprep.mubr.f32.mxu0 %v170
    %1122 = vmatmul.mubr.f32.gmra.mrb[0].mxu0 %v169
    %v1123 = vpop.f32.mrb[0].mxu0
    %v1124 = vadd.f32 0.0, %v1123
    %v1125 = vpop.f32.mrb[0].mxu0
    %1126 = vmatprep.mubr.f32.mxu0 %v173
    %1127 = vmatmul.mubr.f32.gmra.mrb[0].mxu0 %v172
    %v1128 = vpop.f32.mrb[0].mxu0
    %v1129 = vadd.f32 0.0, %v1128
    %v1130 = vpop.f32.mrb[0].mxu0
    %1131 = vmatprep.mubr.f32.mxu0 %v176
    %1132 = vmatmul.mubr.f32.gmra.mrb[0].mxu0 %v175
    %v1133 = vpop.f32.mrb[0].mxu0
    %v1134 = vadd.f32 0.0, %v1133
    %v1135 = vpop.f32.mrb[0].mxu0
    %1136 = vmatprep.mubr.f32.mxu0 %v179
    %1137 = vmatmul.mubr.f32.gmra.mrb[0].mxu0 %v178
    %v1138 = vpop.f32.mrb[0].mxu0
    %v1139 = vadd.f32 0.0, %v1138
    %v1140 = vpop.f32.mrb[0].mxu0
    %1141 = vmatprep.mubr.f32.mxu0 %v182
    %1142 = vmatmul.mubr.f32.gmra.mrb[0].mxu0 %v181
    %v1143 = vpop.f32.mrb[0].mxu0
    %v1144 = vadd.f32 0.0, %v1143
    %v1145 = vpop.f32.mrb[0].mxu0
    %1146 = vdwg.mxu0
    %1147 = vmatprep.subr.mxu0 0.0
    %1148 = vmatpush1.msra.mxu0 %v764
    %1149 = vmatprep.subr.mxu0 0.0
    %1150 = vmatpush1.msra.mxu0 %v769
    %1151 = vmatprep.subr.mxu0 0.0
    %1152 = vmatpush1.msra.mxu0 %v774
    %1153 = vmatprep.subr.mxu0 0.0
    %1154 = vmatpush1.msra.mxu0 %v779
    %1155 = vmatprep.subr.mxu0 0.0
    %1156 = vmatpush1.msra.mxu0 %v784
    %1157 = vmatprep.subr.mxu0 0.0
    %1158 = vmatpush1.msra.mxu0 %v789
    %1159 = vmatprep.subr.mxu0 0.0
    %1160 = vmatpush1.msra.mxu0 %v794
    %1161 = vmatprep.subr.mxu0 0.0
    %1162 = vmatpush1.msra.mxu0 %v799
    %1163 = vmatprep.subr.mxu0 0.0
    %1164 = vmatpush1.msra.mxu0 %v804
    %1165 = vmatprep.subr.mxu0 0.0
    %1166 = vmatpush1.msra.mxu0 %v809
    %1167 = vmatprep.subr.mxu0 0.0
    %1168 = vmatpush1.msra.mxu0 %v814
    %1169 = vmatprep.subr.mxu0 0.0
    %1170 = vmatpush1.msra.mxu0 %v819
    %1171 = vmatprep.subr.mxu0 0.0
    %1172 = vmatpush1.msra.mxu0 %v824
    %1173 = vmatprep.subr.mxu0 0.0
    %1174 = vmatpush1.msra.mxu0 %v829
    %1175 = vmatprep.subr.mxu0 0.0
    %1176 = vmatpush1.msra.mxu0 %v834
    %1177 = vmatprep.subr.mxu0 0.0
    %1178 = vmatpush1.msra.mxu0 %v839
    %1179 = vmatprep.subr.mxu0 0.0
    %1180 = vmatpush1.msra.mxu0 0.0
    %1181 = vmatprep.subr.mxu0 0.0
    %1182 = vmatpush1.msra.mxu0 0.0
    %1183 = vmatprep.subr.mxu0 0.0
    %1184 = vmatpush1.msra.mxu0 0.0
    %1185 = vmatprep.subr.mxu0 0.0
    %1186 = vmatpush1.msra.mxu0 0.0
    %1187 = vmatprep.subr.mxu0 0.0
    %1188 = vmatpush1.msra.mxu0 0.0
    %1189 = vmatprep.subr.mxu0 0.0
    %1190 = vmatpush1.msra.mxu0 0.0
    %1191 = vmatprep.subr.mxu0 0.0
    %1192 = vmatpush1.msra.mxu0 0.0
    %1193 = vmatprep.subr.mxu0 0.0
    %1194 = vmatpush1.msra.mxu0 0.0
    %1195 = vmatprep.subr.mxu0 0.0
    %1196 = vmatpush1.msra.mxu0 0.0
    %1197 = vmatprep.subr.mxu0 0.0
    %1198 = vmatpush1.msra.mxu0 0.0
    %1199 = vmatprep.subr.mxu0 0.0
    %1200 = vmatpush1.msra.mxu0 0.0
    %1201 = vmatprep.subr.mxu0 0.0
    %1202 = vmatpush1.msra.mxu0 0.0
    %1203 = vmatprep.subr.mxu0 0.0
    %1204 = vmatpush1.msra.mxu0 0.0
    %1205 = vmatprep.subr.mxu0 0.0
    %1206 = vmatpush1.msra.mxu0 0.0
    %1207 = vmatprep.subr.mxu0 0.0
    %1208 = vmatpush1.msra.mxu0 0.0
    %1209 = vmatprep.subr.mxu0 0.0
    %1210 = vmatpush1.msra.mxu0 0.0
    %1211 = vmatprep.mubr.f32.mxu0 0.0
    %1212 = vmatmul.mubr.f32.gmra.mrb[0].mxu0 %v42
    %v1213 = vpop.f32.mrb[0].mxu0
    %v1214 = vadd.f32 %v909, %v1213
    %v1215 = vpop.f32.mrb[0].mxu0
    %1216 = vmatprep.mubr.f32.mxu0 0.0
    %1217 = vmatmul.mubr.f32.gmra.mrb[0].mxu0 %v45
    %v1218 = vpop.f32.mrb[0].mxu0
    %v1219 = vadd.f32 %v914, %v1218
    %v1220 = vpop.f32.mrb[0].mxu0
    %1221 = vmatprep.mubr.f32.mxu0 0.0
    %1222 = vmatmul.mubr.f32.gmra.mrb[0].mxu0 %v48
    %v1223 = vpop.f32.mrb[0].mxu0
    %v1224 = vadd.f32 %v919, %v1223
    %v1225 = vpop.f32.mrb[0].mxu0
    %1226 = vmatprep.mubr.f32.mxu0 0.0
    %1227 = vmatmul.mubr.f32.gmra.mrb[0].mxu0 %v51
    %v1228 = vpop.f32.mrb[0].mxu0
    %v1229 = vadd.f32 %v924, %v1228
    %v1230 = vpop.f32.mrb[0].mxu0
    %1231 = vmatprep.mubr.f32.mxu0 0.0
    %1232 = vmatmul.mubr.f32.gmra.mrb[0].mxu0 %v54
    %v1233 = vpop.f32.mrb[0].mxu0
    %v1234 = vadd.f32 %v929, %v1233
    %v1235 = vpop.f32.mrb[0].mxu0
    %1236 = vmatprep.mubr.f32.mxu0 0.0
    %1237 = vmatmul.mubr.f32.gmra.mrb[0].mxu0 %v57
    %v1238 = vpop.f32.mrb[0].mxu0
    %v1239 = vadd.f32 %v934, %v1238
    %v1240 = vpop.f32.mrb[0].mxu0
    %1241 = vmatprep.mubr.f32.mxu0 0.0
    %1242 = vmatmul.mubr.f32.gmra.mrb[0].mxu0 %v60
    %v1243 = vpop.f32.mrb[0].mxu0
    %v1244 = vadd.f32 %v939, %v1243
    %v1245 = vpop.f32.mrb[0].mxu0
    %1246 = vmatprep.mubr.f32.mxu0 0.0
    %1247 = vmatmul.mubr.f32.gmra.mrb[0].mxu0 %v63
    %v1248 = vpop.f32.mrb[0].mxu0
    %v1249 = vadd.f32 %v944, %v1248
    %v1250 = vpop.f32.mrb[0].mxu0
    %1251 = vmatprep.mubr.f32.mxu0 0.0
    %1252 = vmatmul.mubr.f32.gmra.mrb[0].mxu0 %v66
    %v1253 = vpop.f32.mrb[0].mxu0
    %v1254 = vadd.f32 %v949, %v1253
    %v1255 = vpop.f32.mrb[0].mxu0
    %1256 = vmatprep.mubr.f32.mxu0 0.0
    %1257 = vmatmul.mubr.f32.gmra.mrb[0].mxu0 %v69
    %v1258 = vpop.f32.mrb[0].mxu0
    %v1259 = vadd.f32 %v954, %v1258
    %v1260 = vpop.f32.mrb[0].mxu0
    %1261 = vmatprep.mubr.f32.mxu0 0.0
    %1262 = vmatmul.mubr.f32.gmra.mrb[0].mxu0 %v72
    %v1263 = vpop.f32.mrb[0].mxu0
    %v1264 = vadd.f32 %v959, %v1263
    %v1265 = vpop.f32.mrb[0].mxu0
    %1266 = vmatprep.mubr.f32.mxu0 0.0
    %1267 = vmatmul.mubr.f32.gmra.mrb[0].mxu0 %v75
    %v1268 = vpop.f32.mrb[0].mxu0
    %v1269 = vadd.f32 %v964, %v1268
    %v1270 = vpop.f32.mrb[0].mxu0
    %1271 = vmatprep.mubr.f32.mxu0 0.0
    %1272 = vmatmul.mubr.f32.gmra.mrb[0].mxu0 %v78
    %v1273 = vpop.f32.mrb[0].mxu0
    %v1274 = vadd.f32 %v969, %v1273
    %v1275 = vpop.f32.mrb[0].mxu0
    %1276 = vmatprep.mubr.f32.mxu0 0.0
    %1277 = vmatmul.mubr.f32.gmra.mrb[0].mxu0 %v81
    %v1278 = vpop.f32.mrb[0].mxu0
    %v1279 = vadd.f32 %v974, %v1278
    %v1280 = vpop.f32.mrb[0].mxu0
    %1281 = vmatprep.mubr.f32.mxu0 0.0
    %1282 = vmatmul.mubr.f32.gmra.mrb[0].mxu0 %v84
    %v1283 = vpop.f32.mrb[0].mxu0
    %v1284 = vadd.f32 %v979, %v1283
    %v1285 = vpop.f32.mrb[0].mxu0
    %1286 = vmatprep.mubr.f32.mxu0 0.0
    %1287 = vmatmul.mubr.f32.gmra.mrb[0].mxu0 %v87
    %v1288 = vpop.f32.mrb[0].mxu0
    %v1289 = vadd.f32 %v984, %v1288
    %v1290 = vpop.f32.mrb[0].mxu0
    %1291 = vmatprep.mubr.f32.mxu0 0.0
    %1292 = vmatmul.mubr.f32.gmra.mrb[0].mxu0 %v90
    %v1293 = vpop.f32.mrb[0].mxu0
    %v1294 = vadd.f32 %v989, %v1293
    %v1295 = vpop.f32.mrb[0].mxu0
    %1296 = vmatprep.mubr.f32.mxu0 0.0
    %1297 = vmatmul.mubr.f32.gmra.mrb[0].mxu0 %v93
    %v1298 = vpop.f32.mrb[0].mxu0
    %v1299 = vadd.f32 %v994, %v1298
    %v1300 = vpop.f32.mrb[0].mxu0
    %1301 = vmatprep.mubr.f32.mxu0 0.0
    %1302 = vmatmul.mubr.f32.gmra.mrb[0].mxu0 %v96
    %v1303 = vpop.f32.mrb[0].mxu0
    %v1304 = vadd.f32 %v999, %v1303
    %v1305 = vpop.f32.mrb[0].mxu0
    %1306 = vmatprep.mubr.f32.mxu0 0.0
    %1307 = vmatmul.mubr.f32.gmra.mrb[0].mxu0 %v99
    %v1308 = vpop.f32.mrb[0].mxu0
    %v1309 = vadd.f32 %v1004, %v1308
    %v1310 = vpop.f32.mrb[0].mxu0
    %1311 = vmatprep.mubr.f32.mxu0 0.0
    %1312 = vmatmul.mubr.f32.gmra.mrb[0].mxu0 %v102
    %v1313 = vpop.f32.mrb[0].mxu0
    %v1314 = vadd.f32 %v1009, %v1313
    %v1315 = vpop.f32.mrb[0].mxu0
    %1316 = vmatprep.mubr.f32.mxu0 0.0
    %1317 = vmatmul.mubr.f32.gmra.mrb[0].mxu0 %v105
    %v1318 = vpop.f32.mrb[0].mxu0
    %v1319 = vadd.f32 %v1014, %v1318
    %v1320 = vpop.f32.mrb[0].mxu0
    %1321 = vmatprep.mubr.f32.mxu0 0.0
    %1322 = vmatmul.mubr.f32.gmra.mrb[0].mxu0 %v108
    %v1323 = vpop.f32.mrb[0].mxu0
    %v1324 = vadd.f32 %v1019, %v1323
    %v1325 = vpop.f32.mrb[0].mxu0
    %1326 = vmatprep.mubr.f32.mxu0 0.0
    %1327 = vmatmul.mubr.f32.gmra.mrb[0].mxu0 %v111
    %v1328 = vpop.f32.mrb[0].mxu0
    %v1329 = vadd.f32 %v1024, %v1328
    %v1330 = vpop.f32.mrb[0].mxu0
    %1331 = vmatprep.mubr.f32.mxu0 0.0
    %1332 = vmatmul.mubr.f32.gmra.mrb[0].mxu0 %v114
    %v1333 = vpop.f32.mrb[0].mxu0
    %v1334 = vadd.f32 %v1029, %v1333
    %v1335 = vpop.f32.mrb[0].mxu0
    %1336 = vmatprep.mubr.f32.mxu0 0.0
    %1337 = vmatmul.mubr.f32.gmra.mrb[0].mxu0 %v117
    %v1338 = vpop.f32.mrb[0].mxu0
    %v1339 = vadd.f32 %v1034, %v1338
    %v1340 = vpop.f32.mrb[0].mxu0
    %1341 = vmatprep.mubr.f32.mxu0 0.0
    %1342 = vmatmul.mubr.f32.gmra.mrb[0].mxu0 %v120
    %v1343 = vpop.f32.mrb[0].mxu0
    %v1344 = vadd.f32 %v1039, %v1343
    %v1345 = vpop.f32.mrb[0].mxu0
    %1346 = vmatprep.mubr.f32.mxu0 0.0
    %1347 = vmatmul.mubr.f32.gmra.mrb[0].mxu0 %v123
    %v1348 = vpop.f32.mrb[0].mxu0
    %v1349 = vadd.f32 %v1044, %v1348
    %v1350 = vpop.f32.mrb[0].mxu0
    %1351 = vmatprep.mubr.f32.mxu0 0.0
    %1352 = vmatmul.mubr.f32.gmra.mrb[0].mxu0 %v126
    %v1353 = vpop.f32.mrb[0].mxu0
    %v1354 = vadd.f32 %v1049, %v1353
    %v1355 = vpop.f32.mrb[0].mxu0
    %1356 = vmatprep.mubr.f32.mxu0 0.0
    %1357 = vmatmul.mubr.f32.gmra.mrb[0].mxu0 %v129
    %v1358 = vpop.f32.mrb[0].mxu0
    %v1359 = vadd.f32 %v1054, %v1358
    %v1360 = vpop.f32.mrb[0].mxu0
    %1361 = vmatprep.mubr.f32.mxu0 0.0
    %1362 = vmatmul.mubr.f32.gmra.mrb[0].mxu0 %v132
    %v1363 = vpop.f32.mrb[0].mxu0
    %v1364 = vadd.f32 %v1059, %v1363
    %v1365 = vpop.f32.mrb[0].mxu0
    %1366 = vmatprep.mubr.f32.mxu0 0.0
    %1367 = vmatmul.mubr.f32.gmra.mrb[0].mxu0 %v135
    %v1368 = vpop.f32.mrb[0].mxu0
    %v1369 = vadd.f32 %v1064, %v1368
    %v1370 = vpop.f32.mrb[0].mxu0
    %1371 = vmatprep.mubr.f32.mxu0 0.0
    %1372 = vmatmul.mubr.f32.gmra.mrb[0].mxu0 %v138
    %v1373 = vpop.f32.mrb[0].mxu0
    %v1374 = vadd.f32 %v1069, %v1373
    %v1375 = vpop.f32.mrb[0].mxu0
    %1376 = vmatprep.mubr.f32.mxu0 0.0
    %1377 = vmatmul.mubr.f32.gmra.mrb[0].mxu0 %v141
    %v1378 = vpop.f32.mrb[0].mxu0
    %v1379 = vadd.f32 %v1074, %v1378
    %v1380 = vpop.f32.mrb[0].mxu0
    %1381 = vmatprep.mubr.f32.mxu0 0.0
    %1382 = vmatmul.mubr.f32.gmra.mrb[0].mxu0 %v144
    %v1383 = vpop.f32.mrb[0].mxu0
    %v1384 = vadd.f32 %v1079, %v1383
    %v1385 = vpop.f32.mrb[0].mxu0
    %1386 = vmatprep.mubr.f32.mxu0 0.0
    %1387 = vmatmul.mubr.f32.gmra.mrb[0].mxu0 %v147
    %v1388 = vpop.f32.mrb[0].mxu0
    %v1389 = vadd.f32 %v1084, %v1388
    %v1390 = vpop.f32.mrb[0].mxu0
    %1391 = vmatprep.mubr.f32.mxu0 0.0
    %1392 = vmatmul.mubr.f32.gmra.mrb[0].mxu0 %v150
    %v1393 = vpop.f32.mrb[0].mxu0
    %v1394 = vadd.f32 %v1089, %v1393
    %v1395 = vpop.f32.mrb[0].mxu0
    %1396 = vmatprep.mubr.f32.mxu0 0.0
    %1397 = vmatmul.mubr.f32.gmra.mrb[0].mxu0 %v153
    %v1398 = vpop.f32.mrb[0].mxu0
    %v1399 = vadd.f32 %v1094, %v1398
    %v1400 = vpop.f32.mrb[0].mxu0
    %1401 = vmatprep.mubr.f32.mxu0 0.0
    %1402 = vmatmul.mubr.f32.gmra.mrb[0].mxu0 %v156
    %v1403 = vpop.f32.mrb[0].mxu0
    %v1404 = vadd.f32 %v1099, %v1403
    %v1405 = vpop.f32.mrb[0].mxu0
    %1406 = vmatprep.mubr.f32.mxu0 0.0
    %1407 = vmatmul.mubr.f32.gmra.mrb[0].mxu0 %v159
    %v1408 = vpop.f32.mrb[0].mxu0
    %v1409 = vadd.f32 %v1104, %v1408
    %v1410 = vpop.f32.mrb[0].mxu0
    %1411 = vmatprep.mubr.f32.mxu0 0.0
    %1412 = vmatmul.mubr.f32.gmra.mrb[0].mxu0 %v162
    %v1413 = vpop.f32.mrb[0].mxu0
    %v1414 = vadd.f32 %v1109, %v1413
    %v1415 = vpop.f32.mrb[0].mxu0
    %1416 = vmatprep.mubr.f32.mxu0 0.0
    %1417 = vmatmul.mubr.f32.gmra.mrb[0].mxu0 %v165
    %v1418 = vpop.f32.mrb[0].mxu0
    %v1419 = vadd.f32 %v1114, %v1418
    %v1420 = vpop.f32.mrb[0].mxu0
    %1421 = vmatprep.mubr.f32.mxu0 0.0
    %1422 = vmatmul.mubr.f32.gmra.mrb[0].mxu0 %v168
    %v1423 = vpop.f32.mrb[0].mxu0
    %v1424 = vadd.f32 %v1119, %v1423
    %v1425 = vpop.f32.mrb[0].mxu0
    %1426 = vmatprep.mubr.f32.mxu0 0.0
    %1427 = vmatmul.mubr.f32.gmra.mrb[0].mxu0 %v171
    %v1428 = vpop.f32.mrb[0].mxu0
    %v1429 = vadd.f32 %v1124, %v1428
    %v1430 = vpop.f32.mrb[0].mxu0
    %1431 = vmatprep.mubr.f32.mxu0 0.0
    %1432 = vmatmul.mubr.f32.gmra.mrb[0].mxu0 %v174
    %v1433 = vpop.f32.mrb[0].mxu0
    %v1434 = vadd.f32 %v1129, %v1433
    %v1435 = vpop.f32.mrb[0].mxu0
    %1436 = vmatprep.mubr.f32.mxu0 0.0
    %1437 = vmatmul.mubr.f32.gmra.mrb[0].mxu0 %v177
    %v1438 = vpop.f32.mrb[0].mxu0
    %v1439 = vadd.f32 %v1134, %v1438
    %v1440 = vpop.f32.mrb[0].mxu0
    %1441 = vmatprep.mubr.f32.mxu0 0.0
    %1442 = vmatmul.mubr.f32.gmra.mrb[0].mxu0 %v180
    %v1443 = vpop.f32.mrb[0].mxu0
    %v1444 = vadd.f32 %v1139, %v1443
    %v1445 = vpop.f32.mrb[0].mxu0
    %1446 = vmatprep.mubr.f32.mxu0 0.0
    %1447 = vmatmul.mubr.f32.gmra.mrb[0].mxu0 %v183
    %v1448 = vpop.f32.mrb[0].mxu0
    %v1449 = vadd.f32 %v1144, %v1448
    %v1450 = vpop.f32.mrb[0].mxu0
    %1451 = vdwg.mxu0
    %1452 = vst [vmem:[#allocation7] sm:$0xff] %v184
    %1453 = vst [vmem:[#allocation7 + $0x18] sm:$0xff] %v185
    %1454 = vst [vmem:[#allocation7 + $0x30] sm:$0xff] %v186
    %1455 = vst [vmem:[#allocation7 + $0x48] sm:$0xff] %v187
    %1456 = vst [vmem:[#allocation7 + $0x60] sm:$0xff] %v188
    %1457 = vst [vmem:[#allocation7 + $0x78] sm:$0xff] %v189
    %1458 = vst [vmem:[#allocation7 + $0x90] sm:$0xff] %v190
    %1459 = vst [vmem:[#allocation7 + $0xa8] sm:$0xff] %v191
    %1460 = vst [vmem:[#allocation7 + $0xc0] sm:$0xff] %v192
    %1461 = vst [vmem:[#allocation7 + $0xd8] sm:$0xff] %v193
    %1462 = vst [vmem:[#allocation7 + $0xf0] sm:$0xff] %v194
    %1463 = vst [vmem:[#allocation7 + $0x108] sm:$0xff] %v195
    %1464 = vst [vmem:[#allocation7 + $0x120] sm:$0xff] %v196
    %1465 = vst [vmem:[#allocation7 + $0x138] sm:$0xff] %v197
    %1466 = vst [vmem:[#allocation7 + $0x150] sm:$0xff] %v198
    %1467 = vst [vmem:[#allocation7 + $0x168] sm:$0xff] %v199
    %1468 = vst [vmem:[#allocation7 + $0x180] sm:$0xff] %v200
    %1469 = vst [vmem:[#allocation7 + $0x198] sm:$0xff] %v201
    %1470 = vst [vmem:[#allocation7 + $0x1b0] sm:$0xff] %v202
    %1471 = vst [vmem:[#allocation7 + $0x1c8] sm:$0xff] %v203
    %1472 = vst [vmem:[#allocation7 + $0x1e0] sm:$0xff] %v204
    %1473 = vst [vmem:[#allocation7 + $0x1f8] sm:$0xff] %v205
    %1474 = vst [vmem:[#allocation7 + $0x210] sm:$0xff] %v206
    %1475 = vst [vmem:[#allocation7 + $0x228] sm:$0xff] %v207
    %1476 = vst [vmem:[#allocation7 + $0x240] sm:$0xff] %v208
    %1477 = vst [vmem:[#allocation7 + $0x258] sm:$0xff] %v209
    %1478 = vst [vmem:[#allocation7 + $0x270] sm:$0xff] %v210
    %1479 = vst [vmem:[#allocation7 + $0x288] sm:$0xff] %v211
    %1480 = vst [vmem:[#allocation7 + $0x2a0] sm:$0xff] %v212
    %1481 = vst [vmem:[#allocation7 + $0x2b8] sm:$0xff] %v213
    %1482 = vst [vmem:[#allocation7 + $0x2d0] sm:$0xff] %v214
    %1483 = vst [vmem:[#allocation7 + $0x2e8] sm:$0xff] %v215
    %1484 = vst [vmem:[#allocation7 + $0x300] sm:$0xff] %v216
    %1485 = vst [vmem:[#allocation7 + $0x318] sm:$0xff] %v217
    %1486 = vst [vmem:[#allocation7 + $0x330] sm:$0xff] %v218
    %1487 = vst [vmem:[#allocation7 + $0x348] sm:$0xff] %v219
    %1488 = vst [vmem:[#allocation7 + $0x360] sm:$0xff] %v220
    %1489 = vst [vmem:[#allocation7 + $0x378] sm:$0xff] %v221
    %1490 = vst [vmem:[#allocation7 + $0x390] sm:$0xff] %v222
    %1491 = vst [vmem:[#allocation7 + $0x3a8] sm:$0xff] %v223
    %1492 = vst [vmem:[#allocation7 + $0x3c0] sm:$0xff] %v224
    %1493 = vst [vmem:[#allocation7 + $0x3d8] sm:$0xff] %v225
    %1494 = vst [vmem:[#allocation7 + $0x3f0] sm:$0xff] %v226
    %1495 = vst [vmem:[#allocation7 + $0x408] sm:$0xff] %v227
    %1496 = vst [vmem:[#allocation7 + $0x420] sm:$0xff] %v228
    %1497 = vst [vmem:[#allocation7 + $0x438] sm:$0xff] %v229
    %1498 = vst [vmem:[#allocation7 + $0x450] sm:$0xff] %v230
    %1499 = vst [vmem:[#allocation7 + $0x468] sm:$0xff] %v231
    %1500 = vst [vmem:[#allocation7 + $0x8] sm:$0xff] %v604
    %1501 = vst [vmem:[#allocation7 + $0x20] sm:$0xff] %v609
    %1502 = vst [vmem:[#allocation7 + $0x38] sm:$0xff] %v614
    %1503 = vst [vmem:[#allocation7 + $0x50] sm:$0xff] %v619
    %1504 = vst [vmem:[#allocation7 + $0x68] sm:$0xff] %v624
    %1505 = vst [vmem:[#allocation7 + $0x80] sm:$0xff] %v629
    %1506 = vst [vmem:[#allocation7 + $0x98] sm:$0xff] %v634
    %1507 = vst [vmem:[#allocation7 + $0xb0] sm:$0xff] %v639
    %1508 = vst [vmem:[#allocation7 + $0xc8] sm:$0xff] %v644
    %1509 = vst [vmem:[#allocation7 + $0xe0] sm:$0xff] %v649
    %1510 = vst [vmem:[#allocation7 + $0xf8] sm:$0xff] %v654
    %1511 = vst [vmem:[#allocation7 + $0x110] sm:$0xff] %v659
    %1512 = vst [vmem:[#allocation7 + $0x128] sm:$0xff] %v664
    %1513 = vst [vmem:[#allocation7 + $0x140] sm:$0xff] %v669
    %1514 = vst [vmem:[#allocation7 + $0x158] sm:$0xff] %v674
    %1515 = vst [vmem:[#allocation7 + $0x170] sm:$0xff] %v679
    %1516 = vst [vmem:[#allocation7 + $0x188] sm:$0xff] %v684
    %1517 = vst [vmem:[#allocation7 + $0x1a0] sm:$0xff] %v689
    %1518 = vst [vmem:[#allocation7 + $0x1b8] sm:$0xff] %v694
    %1519 = vst [vmem:[#allocation7 + $0x1d0] sm:$0xff] %v699
    %1520 = vst [vmem:[#allocation7 + $0x1e8] sm:$0xff] %v704
    %1521 = vst [vmem:[#allocation7 + $0x200] sm:$0xff] %v709
    %1522 = vst [vmem:[#allocation7 + $0x218] sm:$0xff] %v714
    %1523 = vst [vmem:[#allocation7 + $0x230] sm:$0xff] %v719
    %1524 = vst [vmem:[#allocation7 + $0x248] sm:$0xff] %v724
    %1525 = vst [vmem:[#allocation7 + $0x260] sm:$0xff] %v729
    %1526 = vst [vmem:[#allocation7 + $0x278] sm:$0xff] %v734
    %1527 = vst [vmem:[#allocation7 + $0x290] sm:$0xff] %v739
    %1528 = vst [vmem:[#allocation7 + $0x2a8] sm:$0xff] %v744
    %1529 = vst [vmem:[#allocation7 + $0x2c0] sm:$0xff] %v749
    %1530 = vst [vmem:[#allocation7 + $0x2d8] sm:$0xff] %v754
    %1531 = vst [vmem:[#allocation7 + $0x2f0] sm:$0xff] %v759
    %1532 = vst [vmem:[#allocation7 + $0x308] sm:$0xff] %v764
    %1533 = vst [vmem:[#allocation7 + $0x320] sm:$0xff] %v769
    %1534 = vst [vmem:[#allocation7 + $0x338] sm:$0xff] %v774
    %1535 = vst [vmem:[#allocation7 + $0x350] sm:$0xff] %v779
    %1536 = vst [vmem:[#allocation7 + $0x368] sm:$0xff] %v784
    %1537 = vst [vmem:[#allocation7 + $0x380] sm:$0xff] %v789
    %1538 = vst [vmem:[#allocation7 + $0x398] sm:$0xff] %v794
    %1539 = vst [vmem:[#allocation7 + $0x3b0] sm:$0xff] %v799
    %1540 = vst [vmem:[#allocation7 + $0x3c8] sm:$0xff] %v804
    %1541 = vst [vmem:[#allocation7 + $0x3e0] sm:$0xff] %v809
    %1542 = vst [vmem:[#allocation7 + $0x3f8] sm:$0xff] %v814
    %1543 = vst [vmem:[#allocation7 + $0x410] sm:$0xff] %v819
    %1544 = vst [vmem:[#allocation7 + $0x428] sm:$0xff] %v824
    %1545 = vst [vmem:[#allocation7 + $0x440] sm:$0xff] %v829
    %1546 = vst [vmem:[#allocation7 + $0x458] sm:$0xff] %v834
    %1547 = vst [vmem:[#allocation7 + $0x470] sm:$0xff] %v839
    %1548 = vst [vmem:[#allocation7 + $0x10] sm:$0xff] %v1214
    %1549 = vst [vmem:[#allocation7 + $0x28] sm:$0xff] %v1219
    %1550 = vst [vmem:[#allocation7 + $0x40] sm:$0xff] %v1224
    %1551 = vst [vmem:[#allocation7 + $0x58] sm:$0xff] %v1229
    %1552 = vst [vmem:[#allocation7 + $0x70] sm:$0xff] %v1234
    %1553 = vst [vmem:[#allocation7 + $0x88] sm:$0xff] %v1239
    %1554 = vst [vmem:[#allocation7 + $0xa0] sm:$0xff] %v1244
    %1555 = vst [vmem:[#allocation7 + $0xb8] sm:$0xff] %v1249
    %1556 = vst [vmem:[#allocation7 + $0xd0] sm:$0xff] %v1254
    %1557 = vst [vmem:[#allocation7 + $0xe8] sm:$0xff] %v1259
    %1558 = vst [vmem:[#allocation7 + $0x100] sm:$0xff] %v1264
    %1559 = vst [vmem:[#allocation7 + $0x118] sm:$0xff] %v1269
    %1560 = vst [vmem:[#allocation7 + $0x130] sm:$0xff] %v1274
    %1561 = vst [vmem:[#allocation7 + $0x148] sm:$0xff] %v1279
    %1562 = vst [vmem:[#allocation7 + $0x160] sm:$0xff] %v1284
    %1563 = vst [vmem:[#allocation7 + $0x178] sm:$0xff] %v1289
    %1564 = vst [vmem:[#allocation7 + $0x190] sm:$0xff] %v1294
    %1565 = vst [vmem:[#allocation7 + $0x1a8] sm:$0xff] %v1299
    %1566 = vst [vmem:[#allocation7 + $0x1c0] sm:$0xff] %v1304
    %1567 = vst [vmem:[#allocation7 + $0x1d8] sm:$0xff] %v1309
    %1568 = vst [vmem:[#allocation7 + $0x1f0] sm:$0xff] %v1314
    %1569 = vst [vmem:[#allocation7 + $0x208] sm:$0xff] %v1319
    %1570 = vst [vmem:[#allocation7 + $0x220] sm:$0xff] %v1324
    %1571 = vst [vmem:[#allocation7 + $0x238] sm:$0xff] %v1329
    %1572 = vst [vmem:[#allocation7 + $0x250] sm:$0xff] %v1334
    %1573 = vst [vmem:[#allocation7 + $0x268] sm:$0xff] %v1339
    %1574 = vst [vmem:[#allocation7 + $0x280] sm:$0xff] %v1344
    %1575 = vst [vmem:[#allocation7 + $0x298] sm:$0xff] %v1349
    %1576 = vst [vmem:[#allocation7 + $0x2b0] sm:$0xff] %v1354
    %1577 = vst [vmem:[#allocation7 + $0x2c8] sm:$0xff] %v1359
    %1578 = vst [vmem:[#allocation7 + $0x2e0] sm:$0xff] %v1364
    %1579 = vst [vmem:[#allocation7 + $0x2f8] sm:$0xff] %v1369
    %1580 = vst [vmem:[#allocation7 + $0x310] sm:$0xff] %v1374
    %1581 = vst [vmem:[#allocation7 + $0x328] sm:$0xff] %v1379
    %1582 = vst [vmem:[#allocation7 + $0x340] sm:$0xff] %v1384
    %1583 = vst [vmem:[#allocation7 + $0x358] sm:$0xff] %v1389
    %1584 = vst [vmem:[#allocation7 + $0x370] sm:$0xff] %v1394
    %1585 = vst [vmem:[#allocation7 + $0x388] sm:$0xff] %v1399
    %1586 = vst [vmem:[#allocation7 + $0x3a0] sm:$0xff] %v1404
    %1587 = vst [vmem:[#allocation7 + $0x3b8] sm:$0xff] %v1409
    %1588 = vst [vmem:[#allocation7 + $0x3d0] sm:$0xff] %v1414
    %1589 = vst [vmem:[#allocation7 + $0x3e8] sm:$0xff] %v1419
    %1590 = vst [vmem:[#allocation7 + $0x400] sm:$0xff] %v1424
    %1591 = vst [vmem:[#allocation7 + $0x418] sm:$0xff] %v1429
    %1592 = vst [vmem:[#allocation7 + $0x430] sm:$0xff] %v1434
    %1593 = vst [vmem:[#allocation7 + $0x448] sm:$0xff] %v1439
    %1594 = vst [vmem:[#allocation7 + $0x460] sm:$0xff] %v1444
    %1595 = vst [vmem:[#allocation7 + $0x478] sm:$0xff] %v1449
    // Predicated region
    $region18: #{feature_extract_fused.1} parent=1 // pred_check
      _
    $region19: #{feature_extract_fused.1} parent=1 // pred_check_branch
      %1597 = sbr.rel (0) target = $region21
    $region20: #{feature_extract_fused.1} parent=1 // pred_region
      %s1599 = ssub.s32 18432, 18432
      %1600 = vsyncadd [#allocation4], %s1599
      %s1601 = sshll.u32 [#allocation7], 4
      %s1602 = int_to_ptr.vmem [resolvable:$true] %s1601
      %1607 = dma.vmem_to_hbm [thread:$0]  %s1602, 18432, %s2, [#allocation4], 384, 384, 24
    $region21: #{feature_extract_fused.1} parent=1 // pred_fallthru
      _
    // Predicated region
    $region22: #{feature_extract_fused.1} parent=1 // pred_check
      _
    $region23: #{feature_extract_fused.1} parent=1 // pred_check_branch
      %1609 = sbr.rel (0) target = $region25
    $region24: #{feature_extract_fused.1} parent=1 // pred_region
      %1610 = dma.done [#allocation4], 18432
    $region25: #{feature_extract_fused.1} parent=1 // pred_fallthru
      _
    %1611 = vsyncpa [#allocation3], 1
    %1612 = vsyncpa [#allocation6], 1
    %1613 = vsyncpa [#allocation4], 1

</llo_original>
